<compile_context>
chip_gen: v7x
topology: tpu7x:2x2x1
jax: 0.10.0
libtpu: 0.0.40
codegen_flags: <defaults>
</compile_context>

<pallas_src>
import math

import jax
import jax.numpy as jnp
from jax.experimental import pallas as pl
from jax.experimental.pallas import tpu as pltpu

# ---------------- static configuration (Arguments / design) ----------------
B = 2                       # logical batch (test harness)
BP = 8                      # padded batch used inside the kernel (multiple of 8)
A_IN, A_PROJ = 8, 4         # audio
V_IN, V_PROJ = 16, 4        # video
T_IN, T_HID = 8, 4          # text RNN
SEQ = 8                     # text sequence length
NQ = 4                      # n_qubits
DIM = 1 << NQ               # statevector size (16)
SDIM = 2 * DIM              # lane-stacked [re | im] width (32)
LAYER_REPE = 2
PI = math.pi

assert A_PROJ + V_PROJ + T_HID == 3 * NQ  # quantum_net reshapes to (NQ, 3)

DESIGN = {
    "layer_repe": LAYER_REPE,
    "rot0": "Rx", "rot1": "Ry", "rot2": "Rx", "rot3": "Ry",
    "enta0": ("IsingXX", (0, 1)),
    "enta1": ("IsingZZ", (1, 2)),
    "enta2": ("IsingXX", (2, 3)),
}

# column permutation grouping the fused-projection output as
# [phi_0..phi_3 | theta_0..theta_3 | omega_0..omega_3]
_GROUP_PERM = tuple([3 * i for i in range(NQ)]
                    + [3 * i + 1 for i in range(NQ)]
                    + [3 * i + 2 for i in range(NQ)])


# ------------------------------ kernel --------------------------------------
def qnet_kernel(x_av_ref, x_t_ref,
                w_fuse_ref, b_fuse_ref,
                w_ih_ref, b_ih_ref, w_hh_ref, b_hh_ref,
                m_layers_ref, w_fetch_ref,
                w2_cls_ref, b_cls_ref,
                out_ref):
    f32 = jnp.float32

    # -------- nn.RNN: input-to-hidden matmul hoisted; recurrence on the VPU ---
    ih_all = jnp.dot(x_t_ref[...], w_ih_ref[...],
                     preferred_element_type=f32) + b_ih_ref[...]   # (SEQ*BP, H)
    whh_rows = [w_hh_ref[k:k + 1, :] for k in range(T_HID)]        # (1, H) each
    b_hh = b_hh_ref[...]
    h = jnp.zeros((BP, T_HID), f32)
    for t in range(SEQ):
        acc = ih_all[t * BP:(t + 1) * BP, :] + b_hh
        for k in range(T_HID):                       # h @ w_hh as 4 VPU FMAs
            acc = acc + h[:, k:k + 1] * whh_rows[k]
        h = jnp.tanh(acc)

    # -------- fused classical projections (block-diag Linear_a|Linear_v|Proj_t)
    feat = jnp.concatenate([x_av_ref[...], h], axis=-1)            # (BP, 28)
    x_pre = jnp.dot(feat, w_fuse_ref[...],
                    preferred_element_type=f32) + b_fuse_ref[...]  # (BP, 12)
    # columns grouped as [phi | theta | omega] (wrapper permuted W)
    x_p = jax.nn.sigmoid(x_pre) * PI

    phi = x_p[:, 0:NQ]
    theta = x_p[:, NQ:2 * NQ]
    omega = x_p[:, 2 * NQ:3 * NQ]

    # -------- Rot(phi,theta,omega) coefficients: vectorized, layer-invariant --
    args = jnp.concatenate(
        [0.5 * theta, 0.5 * (phi + omega), 0.5 * (phi - omega)], axis=-1)
    ca = jnp.cos(args)                                             # (BP, 12)
    sa = jnp.sin(args)
    ct, cp, cm = ca[:, 0:NQ], ca[:, NQ:2 * NQ], ca[:, 2 * NQ:3 * NQ]
    st, sp, sm = sa[:, 0:NQ], sa[:, NQ:2 * NQ], sa[:, 2 * NQ:3 * NQ]
    u00_re, u00_im = cp * ct, -sp * ct
    u01_re, u01_im = -cm * st, -sm * st
    u10_re, u10_im = cm * st, -sm * st
    u11_re, u11_im = cp * ct, sp * ct

    def col(a, i):
        return a[:, i:i + 1]

    # -------- bit tables (hoisted once) --------------------------------------
    idx = jax.lax.broadcasted_iota(jnp.int32, (1, DIM), 1)
    idx2 = jax.lax.broadcasted_iota(jnp.int32, (1, SDIM), 1) & (DIM - 1)
    bit0 = [((idx >> (NQ - 1 - w)) & 1) == 0 for w in range(NQ)]    # (1, DIM)
    bit0_2 = [((idx2 >> (NQ - 1 - w)) & 1) == 0 for w in range(NQ)]  # (1, SDIM)

    # -------- layer-0 data re-uploading Rot on |0...0> -> product state (VPU) --
    re = jnp.where(bit0[0], col(u00_re, 0), col(u10_re, 0))        # (BP, DIM)
    im = jnp.where(bit0[0], col(u00_im, 0), col(u10_im, 0))
    for i in range(1, NQ):
        fre = jnp.where(bit0[i], col(u00_re, i), col(u10_re, i))
        fim = jnp.where(bit0[i], col(u00_im, i), col(u10_im, i))
        re, im = re * fre - im * fim, re * fim + im * fre
    s = jnp.concatenate([re, im], axis=-1)                         # (BP, SDIM)

    # -------- hoisted Rot coefficient lane-vectors for re-uploading layers >=1
    rot_coef = []
    if LAYER_REPE > 1:
        for i in range(NQ):
            a_re2 = jnp.where(bit0_2[i], col(u00_re, i), col(u11_re, i))
            a_im2 = jnp.where(bit0_2[i], col(u00_im, i), col(u11_im, i))
            b_re2 = jnp.where(bit0_2[i], col(u01_re, i), col(u10_re, i))
            b_im2 = jnp.where(bit0_2[i], col(u01_im, i), col(u10_im, i))
            rot_coef.append((a_re2, a_im2, b_re2, b_im2))

    # -------- quantum circuit: 1 matmul per trainable layer + 1 per Rot gate --
    for layer in range(LAYER_REPE):
        # folded trainable sub-circuit (rot_j + enta_j ... + final rot)
        m_l = m_layers_ref[layer * SDIM:(layer + 1) * SDIM, :]     # (32, 32)
        s = jnp.dot(s, m_l, preferred_element_type=f32)

        if layer + 1 < LAYER_REPE:
            # data re-uploading Rot on every wire for the next layer
            for i in range(NQ):
                w_f = w_fetch_ref[i * SDIM:(i + 1) * SDIM, :]      # (32, 96)
                f = jnp.dot(s, w_f, preferred_element_type=f32)    # (BP, 96)
                p = f[:, 0:SDIM]           # partner amplitudes  amp[idx ^ m]
                js = f[:, SDIM:2 * SDIM]   # i * state
                jp = f[:, 2 * SDIM:3 * SDIM]   # i * partner
                a_re2, a_im2, b_re2, b_im2 = rot_coef[i]
                s = a_re2 * s + a_im2 * js + b_re2 * p + b_im2 * jp

    # -------- <Z_w> expvals + classifier fused: (s*s) @ [W;W] + b -------------
    out_ref[...] = jnp.dot(s * s, w2_cls_ref[...],
                           preferred_element_type=f32) + b_cls_ref[...]


# ------------------------------ wrapper helpers ------------------------------
def _build_layer_unitaries(q_rot, q_enta):
    """Fold each layer's trainable sub-circuit into a (SDIM, SDIM) real block
    matrix M so that  [re'|im'] = [re|im] @ M  (amp' = U @ amp, column conv.)."""
    c64 = jnp.complex64
    f32 = jnp.float32
    I2 = jnp.eye(2, dtype=f32)
    X2 = jnp.asarray([[0., 1.], [1., 0.]], f32)
    YR = jnp.asarray([[0., -1.], [1., 0.]], f32)
    Z2 = jnp.asarray([[1., 0.], [0., -1.]], f32)
    I16 = jnp.eye(DIM, dtype=c64)

    def expand(gates):
        m = jnp.ones((1, 1), c64)
        for w in range(NQ):                       # wire 0 = MSB (leftmost kron)
            g = gates.get(w, jnp.eye(2, dtype=c64))
            m = jnp.kron(m, g.astype(c64))
        return m

    def rot1q(kind, theta):
        c, s = jnp.cos(0.5 * theta), jnp.sin(0.5 * theta)
        if kind == "Rx":
            return c * I2.astype(c64) - 1j * (s * X2).astype(c64)
        return (c * I2 + s * YR).astype(c64)      # RY is real

    mats = []
    for layer in range(LAYER_REPE):
        U = I16
        for j in range(NQ - 1):
            # trainable single-qubit rotation on wire j
            U = expand({j: rot1q(DESIGN["rot" + str(j)], q_rot[layer, j])}) @ U
            # entangler
            gate, (wa, wb) = DESIGN["enta" + str(j)]
            c = jnp.cos(0.5 * q_enta[layer, j])
            sn = jnp.sin(0.5 * q_enta[layer, j])
            if gate == "IsingXX":
                G = expand({wa: X2, wb: X2})
            else:                                  # IsingZZ
                G = expand({wa: Z2, wb: Z2})
            U = (c * I16 - 1j * sn * G) @ U
        # final trainable rotation on the last wire
        U = expand({NQ - 1: rot1q(DESIGN["rot" + str(NQ - 1)],
                                  q_rot[layer, NQ - 1])}) @ U
        Ur = jnp.real(U).astype(f32)
        Ui = jnp.imag(U).astype(f32)
        M = jnp.concatenate(
            [jnp.concatenate([Ur.T, Ui.T], axis=1),
             jnp.concatenate([-Ui.T, Ur.T], axis=1)], axis=0)      # (32, 32)
        mats.append(M)
    return jnp.concatenate(mats, axis=0)           # (LAYER_REPE*32, 32)


def _build_fetch_matrices():
    """Per-wire (SDIM, 3*SDIM) matrices: s @ W = [partner | i*s | i*partner]."""
    f32 = jnp.float32
    r = jnp.arange(DIM)[:, None]
    c = jnp.arange(DIM)[None, :]
    Z = jnp.zeros((DIM, DIM), f32)
    I = jnp.eye(DIM, dtype=f32)
    Jm = jnp.concatenate([jnp.concatenate([Z, I], axis=1),
                          jnp.concatenate([-I, Z], axis=1)], axis=0)  # mult by i
    ws = []
    for w in range(NQ):
        m = 1 << (NQ - 1 - w)
        P = ((r ^ m) == c).astype(f32)
        Pblk = jnp.concatenate([jnp.concatenate([P, Z], axis=1),
                                jnp.concatenate([Z, P], axis=1)], axis=0)
        ws.append(jnp.concatenate([Pblk, Jm, Pblk @ Jm], axis=1))   # (32, 96)
    return jnp.concatenate(ws, axis=0)              # (NQ*32, 96)


# ------------------------------ wrapper --------------------------------------
def init_params(key):
    ks = jax.random.split(key, 14)

    def lin(k, fan_in, shape):
        bound = 1.0 / math.sqrt(fan_in)
        return jax.random.uniform(k, shape, jnp.float32, -bound, bound)

    # NOTE: w_ih/w_hh and Linear weights stored as (in, out); transpose when
    # loading real torch checkpoints (torch stores (out, in)).
    return dict(
        w_a=lin(ks[0], A_IN, (A_IN, A_PROJ)),   b_a=lin(ks[1], A_IN, (1, A_PROJ)),
        w_v=lin(ks[2], V_IN, (V_IN, V_PROJ)),   b_v=lin(ks[3], V_IN, (1, V_PROJ)),
        w_ih=lin(ks[4], T_HID, (T_IN, T_HID)),  b_ih=lin(ks[5], T_HID, (1, T_HID)),
        w_hh=lin(ks[6], T_HID, (T_HID, T_HID)), b_hh=lin(ks[7], T_HID, (1, T_HID)),
        w_proj=lin(ks[8], T_HID, (T_HID, T_HID)),
        b_proj=lin(ks[9], T_HID, (1, T_HID)),
        w_cls=lin(ks[10], NQ, (NQ, 2)),         b_cls=lin(ks[11], NQ, (1, 2)),
        q_rot=PI * jax.random.uniform(ks[12], (LAYER_REPE, NQ), jnp.float32),
        q_enta=PI * jax.random.uniform(ks[13], (LAYER_REPE, NQ - 1), jnp.float32),
    )


def qnet_forward(params, x_a, x_v, x_t):
    f32 = jnp.float32
    b = x_a.shape[0]
    pad = BP - b

    # pad the batch to BP (multiple of 8); rows are independent end-to-end
    x_av = jnp.pad(jnp.concatenate([x_a, x_v], axis=-1), ((0, pad), (0, 0)))
    x_t_p = jnp.pad(x_t, ((0, pad), (0, 0), (0, 0)))            # (BP, SEQ, T_IN)
    # torch.permute(x_t, (1,0,2)) -> time-major, flattened for one ih matmul
    x_t_flat = jnp.transpose(x_t_p, (1, 0, 2)).reshape(SEQ * BP, T_IN)

    # block-diagonal fused projection [Linear_a | Linear_v | ProjLayer_t],
    # columns permuted to the grouped [phi|theta|omega] layout.
    n_in = A_IN + V_IN + T_HID
    w_blk = jnp.zeros((n_in, 3 * NQ), f32)
    w_blk = w_blk.at[:A_IN, 0:A_PROJ].set(params["w_a"])
    w_blk = w_blk.at[A_IN:A_IN + V_IN, A_PROJ:A_PROJ + V_PROJ].set(params["w_v"])
    w_blk = w_blk.at[A_IN + V_IN:, A_PROJ + V_PROJ:].set(params["w_proj"])
    b_blk = jnp.concatenate([params["b_a"], params["b_v"], params["b_proj"]],
                            axis=-1)
    perm = jnp.asarray(_GROUP_PERM, jnp.int32)
    w_fuse = w_blk[:, perm]
    b_fuse = b_blk[:, perm]

    # per-layer trainable sub-circuit unitaries + per-wire fetch matrices
    m_layers = _build_layer_unitaries(params["q_rot"], params["q_enta"])
    w_fetch = _build_fetch_matrices()

    # fold PauliZ signs into the classifier weight; duplicate for [re|im] halves
    kk = jnp.arange(DIM)[:, None]
    ww = jnp.arange(NQ)[None, :]
    sign_mat = (1 - 2 * ((kk >> (NQ - 1 - ww)) & 1)).astype(f32)
    w_zcls = sign_mat @ params["w_cls"]                             # (16, 2)
    w2_cls = jnp.concatenate([w_zcls, w_zcls], axis=0)              # (32, 2)

    vmem = pl.BlockSpec(memory_space=pltpu.MemorySpace.VMEM)
    out = pl.pallas_call(
        qnet_kernel,
        out_shape=jax.ShapeDtypeStruct((BP, 2), f32),
        in_specs=[vmem] * 12,
        out_specs=vmem,
    )(
        x_av, x_t_flat,
        w_fuse, b_fuse,
        params["w_ih"], params["b_ih"], params["w_hh"], params["b_hh"],
        m_layers, w_fetch,
        w2_cls, params["b_cls"],
    )
    return out[:b]


if __name__ == "__main__":
    key = jax.random.PRNGKey(0)
    k_param, k_a, k_v, k_t = jax.random.split(key, 4)

    params = init_params(k_param)
    x_a = jax.random.normal(k_a, (B, A_IN), jnp.float32)
    x_v = jax.random.normal(k_v, (B, V_IN), jnp.float32)
    x_t = jax.random.normal(k_t, (B, SEQ, T_IN), jnp.float32)   # batch-first

    out = jax.jit(qnet_forward)(params, x_a, x_v, x_t)
    jax.block_until_ready(out)
    assert out.shape == (B, 2) and out.dtype == jnp.float32
    print("KERNEL_OK")
</pallas_src>

<mosaic_0001>
module attributes {stable_mosaic.version = 11 : i64} {
  func.func @qnet_kernel(%arg0: memref<8x24xf32, #tpu.memory_space<vmem>>, %arg1: memref<64x8xf32, #tpu.memory_space<vmem>>, %arg2: memref<28x12xf32, #tpu.memory_space<vmem>>, %arg3: memref<1x12xf32, #tpu.memory_space<vmem>>, %arg4: memref<8x4xf32, #tpu.memory_space<vmem>>, %arg5: memref<1x4xf32, #tpu.memory_space<vmem>>, %arg6: memref<4x4xf32, #tpu.memory_space<vmem>>, %arg7: memref<1x4xf32, #tpu.memory_space<vmem>>, %arg8: memref<64x32xf32, #tpu.memory_space<vmem>>, %arg9: memref<128x96xf32, #tpu.memory_space<vmem>>, %arg10: memref<32x2xf32, #tpu.memory_space<vmem>>, %arg11: memref<1x2xf32, #tpu.memory_space<vmem>>, %arg12: memref<8x2xf32, #tpu.memory_space<vmem>>) attributes {dimension_semantics = [], scalar_prefetch = 0 : i64, scratch_operands = 0 : i64, tpu.core_type = #tpu.core_type<tc>} {
    %c0 = arith.constant 0 : index
    %c0_0 = arith.constant 0 : index
    %0 = vector.load %arg1[%c0, %c0_0] : memref<64x8xf32, #tpu.memory_space<vmem>>, vector<64x8xf32>
    %c0_1 = arith.constant 0 : index
    %c0_2 = arith.constant 0 : index
    %1 = vector.load %arg4[%c0_1, %c0_2] : memref<8x4xf32, #tpu.memory_space<vmem>>, vector<8x4xf32>
    %cst = arith.constant dense<0.000000e+00> : vector<64x4xf32>
    %2 = tpu.matmul %0, %1, %cst {dimension_numbers = #tpu.dot_dimension_numbers<[1], [0], [0], [1], [0, 0, 1, 1], [], []>} : vector<64x8xf32>, vector<8x4xf32>, vector<64x4xf32> -> vector<64x4xf32>
    %c0_3 = arith.constant 0 : index
    %c0_4 = arith.constant 0 : index
    %3 = vector.load %arg5[%c0_3, %c0_4] : memref<1x4xf32, #tpu.memory_space<vmem>>, vector<1x4xf32>
    %4 = vector.broadcast %3 : vector<1x4xf32> to vector<64x4xf32>
    %5 = arith.addf %2, %4 : vector<64x4xf32>
    %c0_5 = arith.constant 0 : index
    %c0_6 = arith.constant 0 : index
    %6 = vector.load %arg6[%c0_5, %c0_6] : memref<4x4xf32, #tpu.memory_space<vmem>>, vector<1x4xf32>
    %c1 = arith.constant 1 : index
    %c0_7 = arith.constant 0 : index
    %7 = vector.load %arg6[%c1, %c0_7] : memref<4x4xf32, #tpu.memory_space<vmem>>, vector<1x4xf32>
    %c2 = arith.constant 2 : index
    %c0_8 = arith.constant 0 : index
    %8 = vector.load %arg6[%c2, %c0_8] : memref<4x4xf32, #tpu.memory_space<vmem>>, vector<1x4xf32>
    %c3 = arith.constant 3 : index
    %c0_9 = arith.constant 0 : index
    %9 = vector.load %arg6[%c3, %c0_9] : memref<4x4xf32, #tpu.memory_space<vmem>>, vector<1x4xf32>
    %c0_10 = arith.constant 0 : index
    %c0_11 = arith.constant 0 : index
    %10 = vector.load %arg7[%c0_10, %c0_11] : memref<1x4xf32, #tpu.memory_space<vmem>>, vector<1x4xf32>
    %cst_12 = arith.constant 0.000000e+00 : f32
    %11 = vector.broadcast %cst_12 : f32 to vector<8x4xf32>
    %12 = vector.extract_strided_slice %5 {offsets = [0, 0], sizes = [8, 4], strides = [1, 1]} : vector<64x4xf32> to vector<8x4xf32>
    %13 = vector.broadcast %10 : vector<1x4xf32> to vector<8x4xf32>
    %14 = arith.addf %12, %13 : vector<8x4xf32>
    %15 = vector.extract_strided_slice %11 {offsets = [0, 0], sizes = [8, 1], strides = [1, 1]} : vector<8x4xf32> to vector<8x1xf32>
    %16 = vector.broadcast %15 : vector<8x1xf32> to vector<8x4xf32>
    %17 = vector.broadcast %6 : vector<1x4xf32> to vector<8x4xf32>
    %18 = arith.mulf %16, %17 : vector<8x4xf32>
    %19 = arith.addf %14, %18 : vector<8x4xf32>
    %20 = vector.extract_strided_slice %11 {offsets = [0, 1], sizes = [8, 1], strides = [1, 1]} : vector<8x4xf32> to vector<8x1xf32>
    %21 = vector.broadcast %20 : vector<8x1xf32> to vector<8x4xf32>
    %22 = vector.broadcast %7 : vector<1x4xf32> to vector<8x4xf32>
    %23 = arith.mulf %21, %22 : vector<8x4xf32>
    %24 = arith.addf %19, %23 : vector<8x4xf32>
    %25 = vector.extract_strided_slice %11 {offsets = [0, 2], sizes = [8, 1], strides = [1, 1]} : vector<8x4xf32> to vector<8x1xf32>
    %26 = vector.broadcast %25 : vector<8x1xf32> to vector<8x4xf32>
    %27 = vector.broadcast %8 : vector<1x4xf32> to vector<8x4xf32>
    %28 = arith.mulf %26, %27 : vector<8x4xf32>
    %29 = arith.addf %24, %28 : vector<8x4xf32>
    %30 = vector.extract_strided_slice %11 {offsets = [0, 3], sizes = [8, 1], strides = [1, 1]} : vector<8x4xf32> to vector<8x1xf32>
    %31 = vector.broadcast %30 : vector<8x1xf32> to vector<8x4xf32>
    %32 = vector.broadcast %9 : vector<1x4xf32> to vector<8x4xf32>
    %33 = arith.mulf %31, %32 : vector<8x4xf32>
    %34 = arith.addf %29, %33 : vector<8x4xf32>
    %35 = math.tanh %34 : vector<8x4xf32>
    %36 = vector.extract_strided_slice %5 {offsets = [8, 0], sizes = [8, 4], strides = [1, 1]} : vector<64x4xf32> to vector<8x4xf32>
    %37 = vector.broadcast %10 : vector<1x4xf32> to vector<8x4xf32>
    %38 = arith.addf %36, %37 : vector<8x4xf32>
    %39 = vector.extract_strided_slice %35 {offsets = [0, 0], sizes = [8, 1], strides = [1, 1]} : vector<8x4xf32> to vector<8x1xf32>
    %40 = vector.broadcast %39 : vector<8x1xf32> to vector<8x4xf32>
    %41 = vector.broadcast %6 : vector<1x4xf32> to vector<8x4xf32>
    %42 = arith.mulf %40, %41 : vector<8x4xf32>
    %43 = arith.addf %38, %42 : vector<8x4xf32>
    %44 = vector.extract_strided_slice %35 {offsets = [0, 1], sizes = [8, 1], strides = [1, 1]} : vector<8x4xf32> to vector<8x1xf32>
    %45 = vector.broadcast %44 : vector<8x1xf32> to vector<8x4xf32>
    %46 = vector.broadcast %7 : vector<1x4xf32> to vector<8x4xf32>
    %47 = arith.mulf %45, %46 : vector<8x4xf32>
    %48 = arith.addf %43, %47 : vector<8x4xf32>
    %49 = vector.extract_strided_slice %35 {offsets = [0, 2], sizes = [8, 1], strides = [1, 1]} : vector<8x4xf32> to vector<8x1xf32>
    %50 = vector.broadcast %49 : vector<8x1xf32> to vector<8x4xf32>
    %51 = vector.broadcast %8 : vector<1x4xf32> to vector<8x4xf32>
    %52 = arith.mulf %50, %51 : vector<8x4xf32>
    %53 = arith.addf %48, %52 : vector<8x4xf32>
    %54 = vector.extract_strided_slice %35 {offsets = [0, 3], sizes = [8, 1], strides = [1, 1]} : vector<8x4xf32> to vector<8x1xf32>
    %55 = vector.broadcast %54 : vector<8x1xf32> to vector<8x4xf32>
    %56 = vector.broadcast %9 : vector<1x4xf32> to vector<8x4xf32>
    %57 = arith.mulf %55, %56 : vector<8x4xf32>
    %58 = arith.addf %53, %57 : vector<8x4xf32>
    %59 = math.tanh %58 : vector<8x4xf32>
    %60 = vector.extract_strided_slice %5 {offsets = [16, 0], sizes = [8, 4], strides = [1, 1]} : vector<64x4xf32> to vector<8x4xf32>
    %61 = vector.broadcast %10 : vector<1x4xf32> to vector<8x4xf32>
    %62 = arith.addf %60, %61 : vector<8x4xf32>
    %63 = vector.extract_strided_slice %59 {offsets = [0, 0], sizes = [8, 1], strides = [1, 1]} : vector<8x4xf32> to vector<8x1xf32>
    %64 = vector.broadcast %63 : vector<8x1xf32> to vector<8x4xf32>
    %65 = vector.broadcast %6 : vector<1x4xf32> to vector<8x4xf32>
    %66 = arith.mulf %64, %65 : vector<8x4xf32>
    %67 = arith.addf %62, %66 : vector<8x4xf32>
    %68 = vector.extract_strided_slice %59 {offsets = [0, 1], sizes = [8, 1], strides = [1, 1]} : vector<8x4xf32> to vector<8x1xf32>
    %69 = vector.broadcast %68 : vector<8x1xf32> to vector<8x4xf32>
    %70 = vector.broadcast %7 : vector<1x4xf32> to vector<8x4xf32>
    %71 = arith.mulf %69, %70 : vector<8x4xf32>
    %72 = arith.addf %67, %71 : vector<8x4xf32>
    %73 = vector.extract_strided_slice %59 {offsets = [0, 2], sizes = [8, 1], strides = [1, 1]} : vector<8x4xf32> to vector<8x1xf32>
    %74 = vector.broadcast %73 : vector<8x1xf32> to vector<8x4xf32>
    %75 = vector.broadcast %8 : vector<1x4xf32> to vector<8x4xf32>
    %76 = arith.mulf %74, %75 : vector<8x4xf32>
    %77 = arith.addf %72, %76 : vector<8x4xf32>
    %78 = vector.extract_strided_slice %59 {offsets = [0, 3], sizes = [8, 1], strides = [1, 1]} : vector<8x4xf32> to vector<8x1xf32>
    %79 = vector.broadcast %78 : vector<8x1xf32> to vector<8x4xf32>
    %80 = vector.broadcast %9 : vector<1x4xf32> to vector<8x4xf32>
    %81 = arith.mulf %79, %80 : vector<8x4xf32>
    %82 = arith.addf %77, %81 : vector<8x4xf32>
    %83 = math.tanh %82 : vector<8x4xf32>
    %84 = vector.extract_strided_slice %5 {offsets = [24, 0], sizes = [8, 4], strides = [1, 1]} : vector<64x4xf32> to vector<8x4xf32>
    %85 = vector.broadcast %10 : vector<1x4xf32> to vector<8x4xf32>
    %86 = arith.addf %84, %85 : vector<8x4xf32>
    %87 = vector.extract_strided_slice %83 {offsets = [0, 0], sizes = [8, 1], strides = [1, 1]} : vector<8x4xf32> to vector<8x1xf32>
    %88 = vector.broadcast %87 : vector<8x1xf32> to vector<8x4xf32>
    %89 = vector.broadcast %6 : vector<1x4xf32> to vector<8x4xf32>
    %90 = arith.mulf %88, %89 : vector<8x4xf32>
    %91 = arith.addf %86, %90 : vector<8x4xf32>
    %92 = vector.extract_strided_slice %83 {offsets = [0, 1], sizes = [8, 1], strides = [1, 1]} : vector<8x4xf32> to vector<8x1xf32>
    %93 = vector.broadcast %92 : vector<8x1xf32> to vector<8x4xf32>
    %94 = vector.broadcast %7 : vector<1x4xf32> to vector<8x4xf32>
    %95 = arith.mulf %93, %94 : vector<8x4xf32>
    %96 = arith.addf %91, %95 : vector<8x4xf32>
    %97 = vector.extract_strided_slice %83 {offsets = [0, 2], sizes = [8, 1], strides = [1, 1]} : vector<8x4xf32> to vector<8x1xf32>
    %98 = vector.broadcast %97 : vector<8x1xf32> to vector<8x4xf32>
    %99 = vector.broadcast %8 : vector<1x4xf32> to vector<8x4xf32>
    %100 = arith.mulf %98, %99 : vector<8x4xf32>
    %101 = arith.addf %96, %100 : vector<8x4xf32>
    %102 = vector.extract_strided_slice %83 {offsets = [0, 3], sizes = [8, 1], strides = [1, 1]} : vector<8x4xf32> to vector<8x1xf32>
    %103 = vector.broadcast %102 : vector<8x1xf32> to vector<8x4xf32>
    %104 = vector.broadcast %9 : vector<1x4xf32> to vector<8x4xf32>
    %105 = arith.mulf %103, %104 : vector<8x4xf32>
    %106 = arith.addf %101, %105 : vector<8x4xf32>
    %107 = math.tanh %106 : vector<8x4xf32>
    %108 = vector.extract_strided_slice %5 {offsets = [32, 0], sizes = [8, 4], strides = [1, 1]} : vector<64x4xf32> to vector<8x4xf32>
    %109 = vector.broadcast %10 : vector<1x4xf32> to vector<8x4xf32>
    %110 = arith.addf %108, %109 : vector<8x4xf32>
    %111 = vector.extract_strided_slice %107 {offsets = [0, 0], sizes = [8, 1], strides = [1, 1]} : vector<8x4xf32> to vector<8x1xf32>
    %112 = vector.broadcast %111 : vector<8x1xf32> to vector<8x4xf32>
    %113 = vector.broadcast %6 : vector<1x4xf32> to vector<8x4xf32>
    %114 = arith.mulf %112, %113 : vector<8x4xf32>
    %115 = arith.addf %110, %114 : vector<8x4xf32>
    %116 = vector.extract_strided_slice %107 {offsets = [0, 1], sizes = [8, 1], strides = [1, 1]} : vector<8x4xf32> to vector<8x1xf32>
    %117 = vector.broadcast %116 : vector<8x1xf32> to vector<8x4xf32>
    %118 = vector.broadcast %7 : vector<1x4xf32> to vector<8x4xf32>
    %119 = arith.mulf %117, %118 : vector<8x4xf32>
    %120 = arith.addf %115, %119 : vector<8x4xf32>
    %121 = vector.extract_strided_slice %107 {offsets = [0, 2], sizes = [8, 1], strides = [1, 1]} : vector<8x4xf32> to vector<8x1xf32>
    %122 = vector.broadcast %121 : vector<8x1xf32> to vector<8x4xf32>
    %123 = vector.broadcast %8 : vector<1x4xf32> to vector<8x4xf32>
    %124 = arith.mulf %122, %123 : vector<8x4xf32>
    %125 = arith.addf %120, %124 : vector<8x4xf32>
    %126 = vector.extract_strided_slice %107 {offsets = [0, 3], sizes = [8, 1], strides = [1, 1]} : vector<8x4xf32> to vector<8x1xf32>
    %127 = vector.broadcast %126 : vector<8x1xf32> to vector<8x4xf32>
    %128 = vector.broadcast %9 : vector<1x4xf32> to vector<8x4xf32>
    %129 = arith.mulf %127, %128 : vector<8x4xf32>
    %130 = arith.addf %125, %129 : vector<8x4xf32>
    %131 = math.tanh %130 : vector<8x4xf32>
    %132 = vector.extract_strided_slice %5 {offsets = [40, 0], sizes = [8, 4], strides = [1, 1]} : vector<64x4xf32> to vector<8x4xf32>
    %133 = vector.broadcast %10 : vector<1x4xf32> to vector<8x4xf32>
    %134 = arith.addf %132, %133 : vector<8x4xf32>
    %135 = vector.extract_strided_slice %131 {offsets = [0, 0], sizes = [8, 1], strides = [1, 1]} : vector<8x4xf32> to vector<8x1xf32>
    %136 = vector.broadcast %135 : vector<8x1xf32> to vector<8x4xf32>
    %137 = vector.broadcast %6 : vector<1x4xf32> to vector<8x4xf32>
    %138 = arith.mulf %136, %137 : vector<8x4xf32>
    %139 = arith.addf %134, %138 : vector<8x4xf32>
    %140 = vector.extract_strided_slice %131 {offsets = [0, 1], sizes = [8, 1], strides = [1, 1]} : vector<8x4xf32> to vector<8x1xf32>
    %141 = vector.broadcast %140 : vector<8x1xf32> to vector<8x4xf32>
    %142 = vector.broadcast %7 : vector<1x4xf32> to vector<8x4xf32>
    %143 = arith.mulf %141, %142 : vector<8x4xf32>
    %144 = arith.addf %139, %143 : vector<8x4xf32>
    %145 = vector.extract_strided_slice %131 {offsets = [0, 2], sizes = [8, 1], strides = [1, 1]} : vector<8x4xf32> to vector<8x1xf32>
    %146 = vector.broadcast %145 : vector<8x1xf32> to vector<8x4xf32>
    %147 = vector.broadcast %8 : vector<1x4xf32> to vector<8x4xf32>
    %148 = arith.mulf %146, %147 : vector<8x4xf32>
    %149 = arith.addf %144, %148 : vector<8x4xf32>
    %150 = vector.extract_strided_slice %131 {offsets = [0, 3], sizes = [8, 1], strides = [1, 1]} : vector<8x4xf32> to vector<8x1xf32>
    %151 = vector.broadcast %150 : vector<8x1xf32> to vector<8x4xf32>
    %152 = vector.broadcast %9 : vector<1x4xf32> to vector<8x4xf32>
    %153 = arith.mulf %151, %152 : vector<8x4xf32>
    %154 = arith.addf %149, %153 : vector<8x4xf32>
    %155 = math.tanh %154 : vector<8x4xf32>
    %156 = vector.extract_strided_slice %5 {offsets = [48, 0], sizes = [8, 4], strides = [1, 1]} : vector<64x4xf32> to vector<8x4xf32>
    %157 = vector.broadcast %10 : vector<1x4xf32> to vector<8x4xf32>
    %158 = arith.addf %156, %157 : vector<8x4xf32>
    %159 = vector.extract_strided_slice %155 {offsets = [0, 0], sizes = [8, 1], strides = [1, 1]} : vector<8x4xf32> to vector<8x1xf32>
    %160 = vector.broadcast %159 : vector<8x1xf32> to vector<8x4xf32>
    %161 = vector.broadcast %6 : vector<1x4xf32> to vector<8x4xf32>
    %162 = arith.mulf %160, %161 : vector<8x4xf32>
    %163 = arith.addf %158, %162 : vector<8x4xf32>
    %164 = vector.extract_strided_slice %155 {offsets = [0, 1], sizes = [8, 1], strides = [1, 1]} : vector<8x4xf32> to vector<8x1xf32>
    %165 = vector.broadcast %164 : vector<8x1xf32> to vector<8x4xf32>
    %166 = vector.broadcast %7 : vector<1x4xf32> to vector<8x4xf32>
    %167 = arith.mulf %165, %166 : vector<8x4xf32>
    %168 = arith.addf %163, %167 : vector<8x4xf32>
    %169 = vector.extract_strided_slice %155 {offsets = [0, 2], sizes = [8, 1], strides = [1, 1]} : vector<8x4xf32> to vector<8x1xf32>
    %170 = vector.broadcast %169 : vector<8x1xf32> to vector<8x4xf32>
    %171 = vector.broadcast %8 : vector<1x4xf32> to vector<8x4xf32>
    %172 = arith.mulf %170, %171 : vector<8x4xf32>
    %173 = arith.addf %168, %172 : vector<8x4xf32>
    %174 = vector.extract_strided_slice %155 {offsets = [0, 3], sizes = [8, 1], strides = [1, 1]} : vector<8x4xf32> to vector<8x1xf32>
    %175 = vector.broadcast %174 : vector<8x1xf32> to vector<8x4xf32>
    %176 = vector.broadcast %9 : vector<1x4xf32> to vector<8x4xf32>
    %177 = arith.mulf %175, %176 : vector<8x4xf32>
    %178 = arith.addf %173, %177 : vector<8x4xf32>
    %179 = math.tanh %178 : vector<8x4xf32>
    %180 = vector.extract_strided_slice %5 {offsets = [56, 0], sizes = [8, 4], strides = [1, 1]} : vector<64x4xf32> to vector<8x4xf32>
    %181 = vector.broadcast %10 : vector<1x4xf32> to vector<8x4xf32>
    %182 = arith.addf %180, %181 : vector<8x4xf32>
    %183 = vector.extract_strided_slice %179 {offsets = [0, 0], sizes = [8, 1], strides = [1, 1]} : vector<8x4xf32> to vector<8x1xf32>
    %184 = vector.broadcast %183 : vector<8x1xf32> to vector<8x4xf32>
    %185 = vector.broadcast %6 : vector<1x4xf32> to vector<8x4xf32>
    %186 = arith.mulf %184, %185 : vector<8x4xf32>
    %187 = arith.addf %182, %186 : vector<8x4xf32>
    %188 = vector.extract_strided_slice %179 {offsets = [0, 1], sizes = [8, 1], strides = [1, 1]} : vector<8x4xf32> to vector<8x1xf32>
    %189 = vector.broadcast %188 : vector<8x1xf32> to vector<8x4xf32>
    %190 = vector.broadcast %7 : vector<1x4xf32> to vector<8x4xf32>
    %191 = arith.mulf %189, %190 : vector<8x4xf32>
    %192 = arith.addf %187, %191 : vector<8x4xf32>
    %193 = vector.extract_strided_slice %179 {offsets = [0, 2], sizes = [8, 1], strides = [1, 1]} : vector<8x4xf32> to vector<8x1xf32>
    %194 = vector.broadcast %193 : vector<8x1xf32> to vector<8x4xf32>
    %195 = vector.broadcast %8 : vector<1x4xf32> to vector<8x4xf32>
    %196 = arith.mulf %194, %195 : vector<8x4xf32>
    %197 = arith.addf %192, %196 : vector<8x4xf32>
    %198 = vector.extract_strided_slice %179 {offsets = [0, 3], sizes = [8, 1], strides = [1, 1]} : vector<8x4xf32> to vector<8x1xf32>
    %199 = vector.broadcast %198 : vector<8x1xf32> to vector<8x4xf32>
    %200 = vector.broadcast %9 : vector<1x4xf32> to vector<8x4xf32>
    %201 = arith.mulf %199, %200 : vector<8x4xf32>
    %202 = arith.addf %197, %201 : vector<8x4xf32>
    %203 = math.tanh %202 : vector<8x4xf32>
    %c0_13 = arith.constant 0 : index
    %c0_14 = arith.constant 0 : index
    %204 = vector.load %arg0[%c0_13, %c0_14] : memref<8x24xf32, #tpu.memory_space<vmem>>, vector<8x24xf32>
    %205 = tpu.concatenate %204, %203 in 1 : vector<8x24xf32>, vector<8x4xf32> -> vector<8x28xf32>
    %c0_15 = arith.constant 0 : index
    %c0_16 = arith.constant 0 : index
    %206 = vector.load %arg2[%c0_15, %c0_16] : memref<28x12xf32, #tpu.memory_space<vmem>>, vector<28x12xf32>
    %cst_17 = arith.constant dense<0.000000e+00> : vector<8x12xf32>
    %207 = tpu.matmul %205, %206, %cst_17 {dimension_numbers = #tpu.dot_dimension_numbers<[1], [0], [0], [1], [0, 0, 1, 1], [], []>} : vector<8x28xf32>, vector<28x12xf32>, vector<8x12xf32> -> vector<8x12xf32>
    %c0_18 = arith.constant 0 : index
    %c0_19 = arith.constant 0 : index
    %208 = vector.load %arg3[%c0_18, %c0_19] : memref<1x12xf32, #tpu.memory_space<vmem>>, vector<1x12xf32>
    %209 = vector.broadcast %208 : vector<1x12xf32> to vector<8x12xf32>
    %210 = arith.addf %207, %209 : vector<8x12xf32>
    %211 = arith.negf %210 : vector<8x12xf32>
    %212 = math.exp %211 : vector<8x12xf32>
    %cst_20 = arith.constant 1.000000e+00 : f32
    %213 = vector.broadcast %cst_20 : f32 to vector<8x12xf32>
    %214 = arith.addf %213, %212 : vector<8x12xf32>
    %215 = arith.divf %213, %214 : vector<8x12xf32>
    %cst_21 = arith.constant 3.14159274 : f32
    %216 = vector.broadcast %cst_21 : f32 to vector<8x12xf32>
    %217 = arith.mulf %215, %216 : vector<8x12xf32>
    %218 = vector.extract_strided_slice %217 {offsets = [0, 0], sizes = [8, 4], strides = [1, 1]} : vector<8x12xf32> to vector<8x4xf32>
    %219 = vector.extract_strided_slice %217 {offsets = [0, 4], sizes = [8, 4], strides = [1, 1]} : vector<8x12xf32> to vector<8x4xf32>
    %220 = vector.extract_strided_slice %217 {offsets = [0, 8], sizes = [8, 4], strides = [1, 1]} : vector<8x12xf32> to vector<8x4xf32>
    %cst_22 = arith.constant 5.000000e-01 : f32
    %221 = vector.broadcast %cst_22 : f32 to vector<8x4xf32>
    %222 = arith.mulf %221, %219 : vector<8x4xf32>
    %223 = arith.addf %218, %220 : vector<8x4xf32>
    %cst_23 = arith.constant 5.000000e-01 : f32
    %224 = vector.broadcast %cst_23 : f32 to vector<8x4xf32>
    %225 = arith.mulf %224, %223 : vector<8x4xf32>
    %226 = arith.subf %218, %220 : vector<8x4xf32>
    %cst_24 = arith.constant 5.000000e-01 : f32
    %227 = vector.broadcast %cst_24 : f32 to vector<8x4xf32>
    %228 = arith.mulf %227, %226 : vector<8x4xf32>
    %229 = tpu.concatenate %222, %225, %228 in 1 : vector<8x4xf32>, vector<8x4xf32>, vector<8x4xf32> -> vector<8x12xf32>
    %230 = math.cos %229 : vector<8x12xf32>
    %231 = math.sin %229 : vector<8x12xf32>
    %232 = vector.extract_strided_slice %230 {offsets = [0, 0], sizes = [8, 4], strides = [1, 1]} : vector<8x12xf32> to vector<8x4xf32>
    %233 = vector.extract_strided_slice %230 {offsets = [0, 4], sizes = [8, 4], strides = [1, 1]} : vector<8x12xf32> to vector<8x4xf32>
    %234 = vector.extract_strided_slice %230 {offsets = [0, 8], sizes = [8, 4], strides = [1, 1]} : vector<8x12xf32> to vector<8x4xf32>
    %235 = vector.extract_strided_slice %231 {offsets = [0, 0], sizes = [8, 4], strides = [1, 1]} : vector<8x12xf32> to vector<8x4xf32>
    %236 = vector.extract_strided_slice %231 {offsets = [0, 4], sizes = [8, 4], strides = [1, 1]} : vector<8x12xf32> to vector<8x4xf32>
    %237 = vector.extract_strided_slice %231 {offsets = [0, 8], sizes = [8, 4], strides = [1, 1]} : vector<8x12xf32> to vector<8x4xf32>
    %238 = arith.mulf %233, %232 : vector<8x4xf32>
    %cst_25 = arith.constant 0.000000e+00 : f32
    %239 = vector.broadcast %cst_25 : f32 to vector<8x4xf32>
    %240 = arith.subf %239, %236 : vector<8x4xf32>
    %241 = arith.mulf %240, %232 : vector<8x4xf32>
    %cst_26 = arith.constant 0.000000e+00 : f32
    %242 = vector.broadcast %cst_26 : f32 to vector<8x4xf32>
    %243 = arith.subf %242, %234 : vector<8x4xf32>
    %244 = arith.mulf %243, %235 : vector<8x4xf32>
    %cst_27 = arith.constant 0.000000e+00 : f32
    %245 = vector.broadcast %cst_27 : f32 to vector<8x4xf32>
    %246 = arith.subf %245, %237 : vector<8x4xf32>
    %247 = arith.mulf %246, %235 : vector<8x4xf32>
    %248 = arith.mulf %234, %235 : vector<8x4xf32>
    %cst_28 = arith.constant 0.000000e+00 : f32
    %249 = vector.broadcast %cst_28 : f32 to vector<8x4xf32>
    %250 = arith.subf %249, %237 : vector<8x4xf32>
    %251 = arith.mulf %250, %235 : vector<8x4xf32>
    %252 = arith.mulf %233, %232 : vector<8x4xf32>
    %253 = arith.mulf %236, %232 : vector<8x4xf32>
    %254 = tpu.iota {dimensions = array<i32: 1>} : vector<1x16xi32>
    %255 = tpu.iota {dimensions = array<i32: 1>} : vector<1x32xi32>
    %c15_i32 = arith.constant 15 : i32
    %256 = vector.broadcast %c15_i32 : i32 to vector<1x32xi32>
    %257 = arith.andi %255, %256 : vector<1x32xi32>
    %c3_i32 = arith.constant 3 : i32
    %258 = vector.broadcast %c3_i32 : i32 to vector<1x16xi32>
    %259 = arith.shrsi %254, %258 : vector<1x16xi32>
    %c1_i32 = arith.constant 1 : i32
    %260 = vector.broadcast %c1_i32 : i32 to vector<1x16xi32>
    %261 = arith.andi %259, %260 : vector<1x16xi32>
    %c0_i32 = arith.constant 0 : i32
    %262 = vector.broadcast %c0_i32 : i32 to vector<1x16xi32>
    %263 = arith.cmpi eq, %261, %262 : vector<1x16xi32>
    %c2_i32 = arith.constant 2 : i32
    %264 = vector.broadcast %c2_i32 : i32 to vector<1x16xi32>
    %265 = arith.shrsi %254, %264 : vector<1x16xi32>
    %c1_i32_29 = arith.constant 1 : i32
    %266 = vector.broadcast %c1_i32_29 : i32 to vector<1x16xi32>
    %267 = arith.andi %265, %266 : vector<1x16xi32>
    %c0_i32_30 = arith.constant 0 : i32
    %268 = vector.broadcast %c0_i32_30 : i32 to vector<1x16xi32>
    %269 = arith.cmpi eq, %267, %268 : vector<1x16xi32>
    %c1_i32_31 = arith.constant 1 : i32
    %270 = vector.broadcast %c1_i32_31 : i32 to vector<1x16xi32>
    %271 = arith.shrsi %254, %270 : vector<1x16xi32>
    %c1_i32_32 = arith.constant 1 : i32
    %272 = vector.broadcast %c1_i32_32 : i32 to vector<1x16xi32>
    %273 = arith.andi %271, %272 : vector<1x16xi32>
    %c0_i32_33 = arith.constant 0 : i32
    %274 = vector.broadcast %c0_i32_33 : i32 to vector<1x16xi32>
    %275 = arith.cmpi eq, %273, %274 : vector<1x16xi32>
    %c0_i32_34 = arith.constant 0 : i32
    %276 = vector.broadcast %c0_i32_34 : i32 to vector<1x16xi32>
    %277 = arith.shrsi %254, %276 : vector<1x16xi32>
    %c1_i32_35 = arith.constant 1 : i32
    %278 = vector.broadcast %c1_i32_35 : i32 to vector<1x16xi32>
    %279 = arith.andi %277, %278 : vector<1x16xi32>
    %c0_i32_36 = arith.constant 0 : i32
    %280 = vector.broadcast %c0_i32_36 : i32 to vector<1x16xi32>
    %281 = arith.cmpi eq, %279, %280 : vector<1x16xi32>
    %c3_i32_37 = arith.constant 3 : i32
    %282 = vector.broadcast %c3_i32_37 : i32 to vector<1x32xi32>
    %283 = arith.shrsi %257, %282 : vector<1x32xi32>
    %c1_i32_38 = arith.constant 1 : i32
    %284 = vector.broadcast %c1_i32_38 : i32 to vector<1x32xi32>
    %285 = arith.andi %283, %284 : vector<1x32xi32>
    %c0_i32_39 = arith.constant 0 : i32
    %286 = vector.broadcast %c0_i32_39 : i32 to vector<1x32xi32>
    %287 = arith.cmpi eq, %285, %286 : vector<1x32xi32>
    %c2_i32_40 = arith.constant 2 : i32
    %288 = vector.broadcast %c2_i32_40 : i32 to vector<1x32xi32>
    %289 = arith.shrsi %257, %288 : vector<1x32xi32>
    %c1_i32_41 = arith.constant 1 : i32
    %290 = vector.broadcast %c1_i32_41 : i32 to vector<1x32xi32>
    %291 = arith.andi %289, %290 : vector<1x32xi32>
    %c0_i32_42 = arith.constant 0 : i32
    %292 = vector.broadcast %c0_i32_42 : i32 to vector<1x32xi32>
    %293 = arith.cmpi eq, %291, %292 : vector<1x32xi32>
    %c1_i32_43 = arith.constant 1 : i32
    %294 = vector.broadcast %c1_i32_43 : i32 to vector<1x32xi32>
    %295 = arith.shrsi %257, %294 : vector<1x32xi32>
    %c1_i32_44 = arith.constant 1 : i32
    %296 = vector.broadcast %c1_i32_44 : i32 to vector<1x32xi32>
    %297 = arith.andi %295, %296 : vector<1x32xi32>
    %c0_i32_45 = arith.constant 0 : i32
    %298 = vector.broadcast %c0_i32_45 : i32 to vector<1x32xi32>
    %299 = arith.cmpi eq, %297, %298 : vector<1x32xi32>
    %c0_i32_46 = arith.constant 0 : i32
    %300 = vector.broadcast %c0_i32_46 : i32 to vector<1x32xi32>
    %301 = arith.shrsi %257, %300 : vector<1x32xi32>
    %c1_i32_47 = arith.constant 1 : i32
    %302 = vector.broadcast %c1_i32_47 : i32 to vector<1x32xi32>
    %303 = arith.andi %301, %302 : vector<1x32xi32>
    %c0_i32_48 = arith.constant 0 : i32
    %304 = vector.broadcast %c0_i32_48 : i32 to vector<1x32xi32>
    %305 = arith.cmpi eq, %303, %304 : vector<1x32xi32>
    %306 = vector.extract_strided_slice %238 {offsets = [0, 0], sizes = [8, 1], strides = [1, 1]} : vector<8x4xf32> to vector<8x1xf32>
    %307 = vector.extract_strided_slice %248 {offsets = [0, 0], sizes = [8, 1], strides = [1, 1]} : vector<8x4xf32> to vector<8x1xf32>
    %308 = vector.shape_cast %263 : vector<1x16xi1> to vector<1x16xi1>
    %309 = vector.broadcast %308 : vector<1x16xi1> to vector<8x16xi1>
    %310 = vector.shape_cast %306 : vector<8x1xf32> to vector<8x1xf32>
    %311 = vector.broadcast %310 : vector<8x1xf32> to vector<8x16xf32>
    %312 = vector.shape_cast %307 : vector<8x1xf32> to vector<8x1xf32>
    %313 = vector.broadcast %312 : vector<8x1xf32> to vector<8x16xf32>
    %314 = arith.select %309, %311, %313 : vector<8x16xi1>, vector<8x16xf32>
    %315 = vector.extract_strided_slice %241 {offsets = [0, 0], sizes = [8, 1], strides = [1, 1]} : vector<8x4xf32> to vector<8x1xf32>
    %316 = vector.extract_strided_slice %251 {offsets = [0, 0], sizes = [8, 1], strides = [1, 1]} : vector<8x4xf32> to vector<8x1xf32>
    %317 = vector.shape_cast %263 : vector<1x16xi1> to vector<1x16xi1>
    %318 = vector.broadcast %317 : vector<1x16xi1> to vector<8x16xi1>
    %319 = vector.shape_cast %315 : vector<8x1xf32> to vector<8x1xf32>
    %320 = vector.broadcast %319 : vector<8x1xf32> to vector<8x16xf32>
    %321 = vector.shape_cast %316 : vector<8x1xf32> to vector<8x1xf32>
    %322 = vector.broadcast %321 : vector<8x1xf32> to vector<8x16xf32>
    %323 = arith.select %318, %320, %322 : vector<8x16xi1>, vector<8x16xf32>
    %324 = vector.extract_strided_slice %238 {offsets = [0, 1], sizes = [8, 1], strides = [1, 1]} : vector<8x4xf32> to vector<8x1xf32>
    %325 = vector.extract_strided_slice %248 {offsets = [0, 1], sizes = [8, 1], strides = [1, 1]} : vector<8x4xf32> to vector<8x1xf32>
    %326 = vector.shape_cast %269 : vector<1x16xi1> to vector<1x16xi1>
    %327 = vector.broadcast %326 : vector<1x16xi1> to vector<8x16xi1>
    %328 = vector.shape_cast %324 : vector<8x1xf32> to vector<8x1xf32>
    %329 = vector.broadcast %328 : vector<8x1xf32> to vector<8x16xf32>
    %330 = vector.shape_cast %325 : vector<8x1xf32> to vector<8x1xf32>
    %331 = vector.broadcast %330 : vector<8x1xf32> to vector<8x16xf32>
    %332 = arith.select %327, %329, %331 : vector<8x16xi1>, vector<8x16xf32>
    %333 = vector.extract_strided_slice %241 {offsets = [0, 1], sizes = [8, 1], strides = [1, 1]} : vector<8x4xf32> to vector<8x1xf32>
    %334 = vector.extract_strided_slice %251 {offsets = [0, 1], sizes = [8, 1], strides = [1, 1]} : vector<8x4xf32> to vector<8x1xf32>
    %335 = vector.shape_cast %269 : vector<1x16xi1> to vector<1x16xi1>
    %336 = vector.broadcast %335 : vector<1x16xi1> to vector<8x16xi1>
    %337 = vector.shape_cast %333 : vector<8x1xf32> to vector<8x1xf32>
    %338 = vector.broadcast %337 : vector<8x1xf32> to vector<8x16xf32>
    %339 = vector.shape_cast %334 : vector<8x1xf32> to vector<8x1xf32>
    %340 = vector.broadcast %339 : vector<8x1xf32> to vector<8x16xf32>
    %341 = arith.select %336, %338, %340 : vector<8x16xi1>, vector<8x16xf32>
    %342 = arith.mulf %314, %332 : vector<8x16xf32>
    %343 = arith.mulf %323, %341 : vector<8x16xf32>
    %344 = arith.subf %342, %343 : vector<8x16xf32>
    %345 = arith.mulf %314, %341 : vector<8x16xf32>
    %346 = arith.mulf %323, %332 : vector<8x16xf32>
    %347 = arith.addf %345, %346 : vector<8x16xf32>
    %348 = vector.extract_strided_slice %238 {offsets = [0, 2], sizes = [8, 1], strides = [1, 1]} : vector<8x4xf32> to vector<8x1xf32>
    %349 = vector.extract_strided_slice %248 {offsets = [0, 2], sizes = [8, 1], strides = [1, 1]} : vector<8x4xf32> to vector<8x1xf32>
    %350 = vector.shape_cast %275 : vector<1x16xi1> to vector<1x16xi1>
    %351 = vector.broadcast %350 : vector<1x16xi1> to vector<8x16xi1>
    %352 = vector.shape_cast %348 : vector<8x1xf32> to vector<8x1xf32>
    %353 = vector.broadcast %352 : vector<8x1xf32> to vector<8x16xf32>
    %354 = vector.shape_cast %349 : vector<8x1xf32> to vector<8x1xf32>
    %355 = vector.broadcast %354 : vector<8x1xf32> to vector<8x16xf32>
    %356 = arith.select %351, %353, %355 : vector<8x16xi1>, vector<8x16xf32>
    %357 = vector.extract_strided_slice %241 {offsets = [0, 2], sizes = [8, 1], strides = [1, 1]} : vector<8x4xf32> to vector<8x1xf32>
    %358 = vector.extract_strided_slice %251 {offsets = [0, 2], sizes = [8, 1], strides = [1, 1]} : vector<8x4xf32> to vector<8x1xf32>
    %359 = vector.shape_cast %275 : vector<1x16xi1> to vector<1x16xi1>
    %360 = vector.broadcast %359 : vector<1x16xi1> to vector<8x16xi1>
    %361 = vector.shape_cast %357 : vector<8x1xf32> to vector<8x1xf32>
    %362 = vector.broadcast %361 : vector<8x1xf32> to vector<8x16xf32>
    %363 = vector.shape_cast %358 : vector<8x1xf32> to vector<8x1xf32>
    %364 = vector.broadcast %363 : vector<8x1xf32> to vector<8x16xf32>
    %365 = arith.select %360, %362, %364 : vector<8x16xi1>, vector<8x16xf32>
    %366 = arith.mulf %344, %356 : vector<8x16xf32>
    %367 = arith.mulf %347, %365 : vector<8x16xf32>
    %368 = arith.subf %366, %367 : vector<8x16xf32>
    %369 = arith.mulf %344, %365 : vector<8x16xf32>
    %370 = arith.mulf %347, %356 : vector<8x16xf32>
    %371 = arith.addf %369, %370 : vector<8x16xf32>
    %372 = vector.extract_strided_slice %238 {offsets = [0, 3], sizes = [8, 1], strides = [1, 1]} : vector<8x4xf32> to vector<8x1xf32>
    %373 = vector.extract_strided_slice %248 {offsets = [0, 3], sizes = [8, 1], strides = [1, 1]} : vector<8x4xf32> to vector<8x1xf32>
    %374 = vector.shape_cast %281 : vector<1x16xi1> to vector<1x16xi1>
    %375 = vector.broadcast %374 : vector<1x16xi1> to vector<8x16xi1>
    %376 = vector.shape_cast %372 : vector<8x1xf32> to vector<8x1xf32>
    %377 = vector.broadcast %376 : vector<8x1xf32> to vector<8x16xf32>
    %378 = vector.shape_cast %373 : vector<8x1xf32> to vector<8x1xf32>
    %379 = vector.broadcast %378 : vector<8x1xf32> to vector<8x16xf32>
    %380 = arith.select %375, %377, %379 : vector<8x16xi1>, vector<8x16xf32>
    %381 = vector.extract_strided_slice %241 {offsets = [0, 3], sizes = [8, 1], strides = [1, 1]} : vector<8x4xf32> to vector<8x1xf32>
    %382 = vector.extract_strided_slice %251 {offsets = [0, 3], sizes = [8, 1], strides = [1, 1]} : vector<8x4xf32> to vector<8x1xf32>
    %383 = vector.shape_cast %281 : vector<1x16xi1> to vector<1x16xi1>
    %384 = vector.broadcast %383 : vector<1x16xi1> to vector<8x16xi1>
    %385 = vector.shape_cast %381 : vector<8x1xf32> to vector<8x1xf32>
    %386 = vector.broadcast %385 : vector<8x1xf32> to vector<8x16xf32>
    %387 = vector.shape_cast %382 : vector<8x1xf32> to vector<8x1xf32>
    %388 = vector.broadcast %387 : vector<8x1xf32> to vector<8x16xf32>
    %389 = arith.select %384, %386, %388 : vector<8x16xi1>, vector<8x16xf32>
    %390 = arith.mulf %368, %380 : vector<8x16xf32>
    %391 = arith.mulf %371, %389 : vector<8x16xf32>
    %392 = arith.subf %390, %391 : vector<8x16xf32>
    %393 = arith.mulf %368, %389 : vector<8x16xf32>
    %394 = arith.mulf %371, %380 : vector<8x16xf32>
    %395 = arith.addf %393, %394 : vector<8x16xf32>
    %396 = tpu.concatenate %392, %395 in 1 : vector<8x16xf32>, vector<8x16xf32> -> vector<8x32xf32>
    %397 = vector.extract_strided_slice %238 {offsets = [0, 0], sizes = [8, 1], strides = [1, 1]} : vector<8x4xf32> to vector<8x1xf32>
    %398 = vector.extract_strided_slice %252 {offsets = [0, 0], sizes = [8, 1], strides = [1, 1]} : vector<8x4xf32> to vector<8x1xf32>
    %399 = vector.shape_cast %287 : vector<1x32xi1> to vector<1x32xi1>
    %400 = vector.broadcast %399 : vector<1x32xi1> to vector<8x32xi1>
    %401 = vector.shape_cast %397 : vector<8x1xf32> to vector<8x1xf32>
    %402 = vector.broadcast %401 : vector<8x1xf32> to vector<8x32xf32>
    %403 = vector.shape_cast %398 : vector<8x1xf32> to vector<8x1xf32>
    %404 = vector.broadcast %403 : vector<8x1xf32> to vector<8x32xf32>
    %405 = arith.select %400, %402, %404 : vector<8x32xi1>, vector<8x32xf32>
    %406 = vector.extract_strided_slice %241 {offsets = [0, 0], sizes = [8, 1], strides = [1, 1]} : vector<8x4xf32> to vector<8x1xf32>
    %407 = vector.extract_strided_slice %253 {offsets = [0, 0], sizes = [8, 1], strides = [1, 1]} : vector<8x4xf32> to vector<8x1xf32>
    %408 = vector.shape_cast %287 : vector<1x32xi1> to vector<1x32xi1>
    %409 = vector.broadcast %408 : vector<1x32xi1> to vector<8x32xi1>
    %410 = vector.shape_cast %406 : vector<8x1xf32> to vector<8x1xf32>
    %411 = vector.broadcast %410 : vector<8x1xf32> to vector<8x32xf32>
    %412 = vector.shape_cast %407 : vector<8x1xf32> to vector<8x1xf32>
    %413 = vector.broadcast %412 : vector<8x1xf32> to vector<8x32xf32>
    %414 = arith.select %409, %411, %413 : vector<8x32xi1>, vector<8x32xf32>
    %415 = vector.extract_strided_slice %244 {offsets = [0, 0], sizes = [8, 1], strides = [1, 1]} : vector<8x4xf32> to vector<8x1xf32>
    %416 = vector.extract_strided_slice %248 {offsets = [0, 0], sizes = [8, 1], strides = [1, 1]} : vector<8x4xf32> to vector<8x1xf32>
    %417 = vector.shape_cast %287 : vector<1x32xi1> to vector<1x32xi1>
    %418 = vector.broadcast %417 : vector<1x32xi1> to vector<8x32xi1>
    %419 = vector.shape_cast %415 : vector<8x1xf32> to vector<8x1xf32>
    %420 = vector.broadcast %419 : vector<8x1xf32> to vector<8x32xf32>
    %421 = vector.shape_cast %416 : vector<8x1xf32> to vector<8x1xf32>
    %422 = vector.broadcast %421 : vector<8x1xf32> to vector<8x32xf32>
    %423 = arith.select %418, %420, %422 : vector<8x32xi1>, vector<8x32xf32>
    %424 = vector.extract_strided_slice %247 {offsets = [0, 0], sizes = [8, 1], strides = [1, 1]} : vector<8x4xf32> to vector<8x1xf32>
    %425 = vector.extract_strided_slice %251 {offsets = [0, 0], sizes = [8, 1], strides = [1, 1]} : vector<8x4xf32> to vector<8x1xf32>
    %426 = vector.shape_cast %287 : vector<1x32xi1> to vector<1x32xi1>
    %427 = vector.broadcast %426 : vector<1x32xi1> to vector<8x32xi1>
    %428 = vector.shape_cast %424 : vector<8x1xf32> to vector<8x1xf32>
    %429 = vector.broadcast %428 : vector<8x1xf32> to vector<8x32xf32>
    %430 = vector.shape_cast %425 : vector<8x1xf32> to vector<8x1xf32>
    %431 = vector.broadcast %430 : vector<8x1xf32> to vector<8x32xf32>
    %432 = arith.select %427, %429, %431 : vector<8x32xi1>, vector<8x32xf32>
    %433 = vector.extract_strided_slice %238 {offsets = [0, 1], sizes = [8, 1], strides = [1, 1]} : vector<8x4xf32> to vector<8x1xf32>
    %434 = vector.extract_strided_slice %252 {offsets = [0, 1], sizes = [8, 1], strides = [1, 1]} : vector<8x4xf32> to vector<8x1xf32>
    %435 = vector.shape_cast %293 : vector<1x32xi1> to vector<1x32xi1>
    %436 = vector.broadcast %435 : vector<1x32xi1> to vector<8x32xi1>
    %437 = vector.shape_cast %433 : vector<8x1xf32> to vector<8x1xf32>
    %438 = vector.broadcast %437 : vector<8x1xf32> to vector<8x32xf32>
    %439 = vector.shape_cast %434 : vector<8x1xf32> to vector<8x1xf32>
    %440 = vector.broadcast %439 : vector<8x1xf32> to vector<8x32xf32>
    %441 = arith.select %436, %438, %440 : vector<8x32xi1>, vector<8x32xf32>
    %442 = vector.extract_strided_slice %241 {offsets = [0, 1], sizes = [8, 1], strides = [1, 1]} : vector<8x4xf32> to vector<8x1xf32>
    %443 = vector.extract_strided_slice %253 {offsets = [0, 1], sizes = [8, 1], strides = [1, 1]} : vector<8x4xf32> to vector<8x1xf32>
    %444 = vector.shape_cast %293 : vector<1x32xi1> to vector<1x32xi1>
    %445 = vector.broadcast %444 : vector<1x32xi1> to vector<8x32xi1>
    %446 = vector.shape_cast %442 : vector<8x1xf32> to vector<8x1xf32>
    %447 = vector.broadcast %446 : vector<8x1xf32> to vector<8x32xf32>
    %448 = vector.shape_cast %443 : vector<8x1xf32> to vector<8x1xf32>
    %449 = vector.broadcast %448 : vector<8x1xf32> to vector<8x32xf32>
    %450 = arith.select %445, %447, %449 : vector<8x32xi1>, vector<8x32xf32>
    %451 = vector.extract_strided_slice %244 {offsets = [0, 1], sizes = [8, 1], strides = [1, 1]} : vector<8x4xf32> to vector<8x1xf32>
    %452 = vector.extract_strided_slice %248 {offsets = [0, 1], sizes = [8, 1], strides = [1, 1]} : vector<8x4xf32> to vector<8x1xf32>
    %453 = vector.shape_cast %293 : vector<1x32xi1> to vector<1x32xi1>
    %454 = vector.broadcast %453 : vector<1x32xi1> to vector<8x32xi1>
    %455 = vector.shape_cast %451 : vector<8x1xf32> to vector<8x1xf32>
    %456 = vector.broadcast %455 : vector<8x1xf32> to vector<8x32xf32>
    %457 = vector.shape_cast %452 : vector<8x1xf32> to vector<8x1xf32>
    %458 = vector.broadcast %457 : vector<8x1xf32> to vector<8x32xf32>
    %459 = arith.select %454, %456, %458 : vector<8x32xi1>, vector<8x32xf32>
    %460 = vector.extract_strided_slice %247 {offsets = [0, 1], sizes = [8, 1], strides = [1, 1]} : vector<8x4xf32> to vector<8x1xf32>
    %461 = vector.extract_strided_slice %251 {offsets = [0, 1], sizes = [8, 1], strides = [1, 1]} : vector<8x4xf32> to vector<8x1xf32>
    %462 = vector.shape_cast %293 : vector<1x32xi1> to vector<1x32xi1>
    %463 = vector.broadcast %462 : vector<1x32xi1> to vector<8x32xi1>
    %464 = vector.shape_cast %460 : vector<8x1xf32> to vector<8x1xf32>
    %465 = vector.broadcast %464 : vector<8x1xf32> to vector<8x32xf32>
    %466 = vector.shape_cast %461 : vector<8x1xf32> to vector<8x1xf32>
    %467 = vector.broadcast %466 : vector<8x1xf32> to vector<8x32xf32>
    %468 = arith.select %463, %465, %467 : vector<8x32xi1>, vector<8x32xf32>
    %469 = vector.extract_strided_slice %238 {offsets = [0, 2], sizes = [8, 1], strides = [1, 1]} : vector<8x4xf32> to vector<8x1xf32>
    %470 = vector.extract_strided_slice %252 {offsets = [0, 2], sizes = [8, 1], strides = [1, 1]} : vector<8x4xf32> to vector<8x1xf32>
    %471 = vector.shape_cast %299 : vector<1x32xi1> to vector<1x32xi1>
    %472 = vector.broadcast %471 : vector<1x32xi1> to vector<8x32xi1>
    %473 = vector.shape_cast %469 : vector<8x1xf32> to vector<8x1xf32>
    %474 = vector.broadcast %473 : vector<8x1xf32> to vector<8x32xf32>
    %475 = vector.shape_cast %470 : vector<8x1xf32> to vector<8x1xf32>
    %476 = vector.broadcast %475 : vector<8x1xf32> to vector<8x32xf32>
    %477 = arith.select %472, %474, %476 : vector<8x32xi1>, vector<8x32xf32>
    %478 = vector.extract_strided_slice %241 {offsets = [0, 2], sizes = [8, 1], strides = [1, 1]} : vector<8x4xf32> to vector<8x1xf32>
    %479 = vector.extract_strided_slice %253 {offsets = [0, 2], sizes = [8, 1], strides = [1, 1]} : vector<8x4xf32> to vector<8x1xf32>
    %480 = vector.shape_cast %299 : vector<1x32xi1> to vector<1x32xi1>
    %481 = vector.broadcast %480 : vector<1x32xi1> to vector<8x32xi1>
    %482 = vector.shape_cast %478 : vector<8x1xf32> to vector<8x1xf32>
    %483 = vector.broadcast %482 : vector<8x1xf32> to vector<8x32xf32>
    %484 = vector.shape_cast %479 : vector<8x1xf32> to vector<8x1xf32>
    %485 = vector.broadcast %484 : vector<8x1xf32> to vector<8x32xf32>
    %486 = arith.select %481, %483, %485 : vector<8x32xi1>, vector<8x32xf32>
    %487 = vector.extract_strided_slice %244 {offsets = [0, 2], sizes = [8, 1], strides = [1, 1]} : vector<8x4xf32> to vector<8x1xf32>
    %488 = vector.extract_strided_slice %248 {offsets = [0, 2], sizes = [8, 1], strides = [1, 1]} : vector<8x4xf32> to vector<8x1xf32>
    %489 = vector.shape_cast %299 : vector<1x32xi1> to vector<1x32xi1>
    %490 = vector.broadcast %489 : vector<1x32xi1> to vector<8x32xi1>
    %491 = vector.shape_cast %487 : vector<8x1xf32> to vector<8x1xf32>
    %492 = vector.broadcast %491 : vector<8x1xf32> to vector<8x32xf32>
    %493 = vector.shape_cast %488 : vector<8x1xf32> to vector<8x1xf32>
    %494 = vector.broadcast %493 : vector<8x1xf32> to vector<8x32xf32>
    %495 = arith.select %490, %492, %494 : vector<8x32xi1>, vector<8x32xf32>
    %496 = vector.extract_strided_slice %247 {offsets = [0, 2], sizes = [8, 1], strides = [1, 1]} : vector<8x4xf32> to vector<8x1xf32>
    %497 = vector.extract_strided_slice %251 {offsets = [0, 2], sizes = [8, 1], strides = [1, 1]} : vector<8x4xf32> to vector<8x1xf32>
    %498 = vector.shape_cast %299 : vector<1x32xi1> to vector<1x32xi1>
    %499 = vector.broadcast %498 : vector<1x32xi1> to vector<8x32xi1>
    %500 = vector.shape_cast %496 : vector<8x1xf32> to vector<8x1xf32>
    %501 = vector.broadcast %500 : vector<8x1xf32> to vector<8x32xf32>
    %502 = vector.shape_cast %497 : vector<8x1xf32> to vector<8x1xf32>
    %503 = vector.broadcast %502 : vector<8x1xf32> to vector<8x32xf32>
    %504 = arith.select %499, %501, %503 : vector<8x32xi1>, vector<8x32xf32>
    %505 = vector.extract_strided_slice %238 {offsets = [0, 3], sizes = [8, 1], strides = [1, 1]} : vector<8x4xf32> to vector<8x1xf32>
    %506 = vector.extract_strided_slice %252 {offsets = [0, 3], sizes = [8, 1], strides = [1, 1]} : vector<8x4xf32> to vector<8x1xf32>
    %507 = vector.shape_cast %305 : vector<1x32xi1> to vector<1x32xi1>
    %508 = vector.broadcast %507 : vector<1x32xi1> to vector<8x32xi1>
    %509 = vector.shape_cast %505 : vector<8x1xf32> to vector<8x1xf32>
    %510 = vector.broadcast %509 : vector<8x1xf32> to vector<8x32xf32>
    %511 = vector.shape_cast %506 : vector<8x1xf32> to vector<8x1xf32>
    %512 = vector.broadcast %511 : vector<8x1xf32> to vector<8x32xf32>
    %513 = arith.select %508, %510, %512 : vector<8x32xi1>, vector<8x32xf32>
    %514 = vector.extract_strided_slice %241 {offsets = [0, 3], sizes = [8, 1], strides = [1, 1]} : vector<8x4xf32> to vector<8x1xf32>
    %515 = vector.extract_strided_slice %253 {offsets = [0, 3], sizes = [8, 1], strides = [1, 1]} : vector<8x4xf32> to vector<8x1xf32>
    %516 = vector.shape_cast %305 : vector<1x32xi1> to vector<1x32xi1>
    %517 = vector.broadcast %516 : vector<1x32xi1> to vector<8x32xi1>
    %518 = vector.shape_cast %514 : vector<8x1xf32> to vector<8x1xf32>
    %519 = vector.broadcast %518 : vector<8x1xf32> to vector<8x32xf32>
    %520 = vector.shape_cast %515 : vector<8x1xf32> to vector<8x1xf32>
    %521 = vector.broadcast %520 : vector<8x1xf32> to vector<8x32xf32>
    %522 = arith.select %517, %519, %521 : vector<8x32xi1>, vector<8x32xf32>
    %523 = vector.extract_strided_slice %244 {offsets = [0, 3], sizes = [8, 1], strides = [1, 1]} : vector<8x4xf32> to vector<8x1xf32>
    %524 = vector.extract_strided_slice %248 {offsets = [0, 3], sizes = [8, 1], strides = [1, 1]} : vector<8x4xf32> to vector<8x1xf32>
    %525 = vector.shape_cast %305 : vector<1x32xi1> to vector<1x32xi1>
    %526 = vector.broadcast %525 : vector<1x32xi1> to vector<8x32xi1>
    %527 = vector.shape_cast %523 : vector<8x1xf32> to vector<8x1xf32>
    %528 = vector.broadcast %527 : vector<8x1xf32> to vector<8x32xf32>
    %529 = vector.shape_cast %524 : vector<8x1xf32> to vector<8x1xf32>
    %530 = vector.broadcast %529 : vector<8x1xf32> to vector<8x32xf32>
    %531 = arith.select %526, %528, %530 : vector<8x32xi1>, vector<8x32xf32>
    %532 = vector.extract_strided_slice %247 {offsets = [0, 3], sizes = [8, 1], strides = [1, 1]} : vector<8x4xf32> to vector<8x1xf32>
    %533 = vector.extract_strided_slice %251 {offsets = [0, 3], sizes = [8, 1], strides = [1, 1]} : vector<8x4xf32> to vector<8x1xf32>
    %534 = vector.shape_cast %305 : vector<1x32xi1> to vector<1x32xi1>
    %535 = vector.broadcast %534 : vector<1x32xi1> to vector<8x32xi1>
    %536 = vector.shape_cast %532 : vector<8x1xf32> to vector<8x1xf32>
    %537 = vector.broadcast %536 : vector<8x1xf32> to vector<8x32xf32>
    %538 = vector.shape_cast %533 : vector<8x1xf32> to vector<8x1xf32>
    %539 = vector.broadcast %538 : vector<8x1xf32> to vector<8x32xf32>
    %540 = arith.select %535, %537, %539 : vector<8x32xi1>, vector<8x32xf32>
    %c0_49 = arith.constant 0 : index
    %c0_50 = arith.constant 0 : index
    %541 = vector.load %arg8[%c0_49, %c0_50] : memref<64x32xf32, #tpu.memory_space<vmem>>, vector<32x32xf32>
    %cst_51 = arith.constant dense<0.000000e+00> : vector<8x32xf32>
    %542 = tpu.matmul %396, %541, %cst_51 {dimension_numbers = #tpu.dot_dimension_numbers<[1], [0], [0], [1], [0, 0, 1, 1], [], []>} : vector<8x32xf32>, vector<32x32xf32>, vector<8x32xf32> -> vector<8x32xf32>
    %c0_52 = arith.constant 0 : index
    %c0_53 = arith.constant 0 : index
    %543 = vector.load %arg9[%c0_52, %c0_53] : memref<128x96xf32, #tpu.memory_space<vmem>>, vector<32x96xf32>
    %cst_54 = arith.constant dense<0.000000e+00> : vector<8x96xf32>
    %544 = tpu.matmul %542, %543, %cst_54 {dimension_numbers = #tpu.dot_dimension_numbers<[1], [0], [0], [1], [0, 0, 1, 1], [], []>} : vector<8x32xf32>, vector<32x96xf32>, vector<8x96xf32> -> vector<8x96xf32>
    %545 = vector.extract_strided_slice %544 {offsets = [0, 0], sizes = [8, 32], strides = [1, 1]} : vector<8x96xf32> to vector<8x32xf32>
    %546 = vector.extract_strided_slice %544 {offsets = [0, 32], sizes = [8, 32], strides = [1, 1]} : vector<8x96xf32> to vector<8x32xf32>
    %547 = vector.extract_strided_slice %544 {offsets = [0, 64], sizes = [8, 32], strides = [1, 1]} : vector<8x96xf32> to vector<8x32xf32>
    %548 = arith.mulf %405, %542 : vector<8x32xf32>
    %549 = arith.mulf %414, %546 : vector<8x32xf32>
    %550 = arith.addf %548, %549 : vector<8x32xf32>
    %551 = arith.mulf %423, %545 : vector<8x32xf32>
    %552 = arith.addf %550, %551 : vector<8x32xf32>
    %553 = arith.mulf %432, %547 : vector<8x32xf32>
    %554 = arith.addf %552, %553 : vector<8x32xf32>
    %c32 = arith.constant 32 : index
    %c0_55 = arith.constant 0 : index
    %555 = vector.load %arg9[%c32, %c0_55] : memref<128x96xf32, #tpu.memory_space<vmem>>, vector<32x96xf32>
    %cst_56 = arith.constant dense<0.000000e+00> : vector<8x96xf32>
    %556 = tpu.matmul %554, %555, %cst_56 {dimension_numbers = #tpu.dot_dimension_numbers<[1], [0], [0], [1], [0, 0, 1, 1], [], []>} : vector<8x32xf32>, vector<32x96xf32>, vector<8x96xf32> -> vector<8x96xf32>
    %557 = vector.extract_strided_slice %556 {offsets = [0, 0], sizes = [8, 32], strides = [1, 1]} : vector<8x96xf32> to vector<8x32xf32>
    %558 = vector.extract_strided_slice %556 {offsets = [0, 32], sizes = [8, 32], strides = [1, 1]} : vector<8x96xf32> to vector<8x32xf32>
    %559 = vector.extract_strided_slice %556 {offsets = [0, 64], sizes = [8, 32], strides = [1, 1]} : vector<8x96xf32> to vector<8x32xf32>
    %560 = arith.mulf %441, %554 : vector<8x32xf32>
    %561 = arith.mulf %450, %558 : vector<8x32xf32>
    %562 = arith.addf %560, %561 : vector<8x32xf32>
    %563 = arith.mulf %459, %557 : vector<8x32xf32>
    %564 = arith.addf %562, %563 : vector<8x32xf32>
    %565 = arith.mulf %468, %559 : vector<8x32xf32>
    %566 = arith.addf %564, %565 : vector<8x32xf32>
    %c64 = arith.constant 64 : index
    %c0_57 = arith.constant 0 : index
    %567 = vector.load %arg9[%c64, %c0_57] : memref<128x96xf32, #tpu.memory_space<vmem>>, vector<32x96xf32>
    %cst_58 = arith.constant dense<0.000000e+00> : vector<8x96xf32>
    %568 = tpu.matmul %566, %567, %cst_58 {dimension_numbers = #tpu.dot_dimension_numbers<[1], [0], [0], [1], [0, 0, 1, 1], [], []>} : vector<8x32xf32>, vector<32x96xf32>, vector<8x96xf32> -> vector<8x96xf32>
    %569 = vector.extract_strided_slice %568 {offsets = [0, 0], sizes = [8, 32], strides = [1, 1]} : vector<8x96xf32> to vector<8x32xf32>
    %570 = vector.extract_strided_slice %568 {offsets = [0, 32], sizes = [8, 32], strides = [1, 1]} : vector<8x96xf32> to vector<8x32xf32>
    %571 = vector.extract_strided_slice %568 {offsets = [0, 64], sizes = [8, 32], strides = [1, 1]} : vector<8x96xf32> to vector<8x32xf32>
    %572 = arith.mulf %477, %566 : vector<8x32xf32>
    %573 = arith.mulf %486, %570 : vector<8x32xf32>
    %574 = arith.addf %572, %573 : vector<8x32xf32>
    %575 = arith.mulf %495, %569 : vector<8x32xf32>
    %576 = arith.addf %574, %575 : vector<8x32xf32>
    %577 = arith.mulf %504, %571 : vector<8x32xf32>
    %578 = arith.addf %576, %577 : vector<8x32xf32>
    %c96 = arith.constant 96 : index
    %c0_59 = arith.constant 0 : index
    %579 = vector.load %arg9[%c96, %c0_59] : memref<128x96xf32, #tpu.memory_space<vmem>>, vector<32x96xf32>
    %cst_60 = arith.constant dense<0.000000e+00> : vector<8x96xf32>
    %580 = tpu.matmul %578, %579, %cst_60 {dimension_numbers = #tpu.dot_dimension_numbers<[1], [0], [0], [1], [0, 0, 1, 1], [], []>} : vector<8x32xf32>, vector<32x96xf32>, vector<8x96xf32> -> vector<8x96xf32>
    %581 = vector.extract_strided_slice %580 {offsets = [0, 0], sizes = [8, 32], strides = [1, 1]} : vector<8x96xf32> to vector<8x32xf32>
    %582 = vector.extract_strided_slice %580 {offsets = [0, 32], sizes = [8, 32], strides = [1, 1]} : vector<8x96xf32> to vector<8x32xf32>
    %583 = vector.extract_strided_slice %580 {offsets = [0, 64], sizes = [8, 32], strides = [1, 1]} : vector<8x96xf32> to vector<8x32xf32>
    %584 = arith.mulf %513, %578 : vector<8x32xf32>
    %585 = arith.mulf %522, %582 : vector<8x32xf32>
    %586 = arith.addf %584, %585 : vector<8x32xf32>
    %587 = arith.mulf %531, %581 : vector<8x32xf32>
    %588 = arith.addf %586, %587 : vector<8x32xf32>
    %589 = arith.mulf %540, %583 : vector<8x32xf32>
    %590 = arith.addf %588, %589 : vector<8x32xf32>
    %c32_61 = arith.constant 32 : index
    %c0_62 = arith.constant 0 : index
    %591 = vector.load %arg8[%c32_61, %c0_62] : memref<64x32xf32, #tpu.memory_space<vmem>>, vector<32x32xf32>
    %cst_63 = arith.constant dense<0.000000e+00> : vector<8x32xf32>
    %592 = tpu.matmul %590, %591, %cst_63 {dimension_numbers = #tpu.dot_dimension_numbers<[1], [0], [0], [1], [0, 0, 1, 1], [], []>} : vector<8x32xf32>, vector<32x32xf32>, vector<8x32xf32> -> vector<8x32xf32>
    %593 = arith.mulf %592, %592 : vector<8x32xf32>
    %c0_64 = arith.constant 0 : index
    %c0_65 = arith.constant 0 : index
    %594 = vector.load %arg10[%c0_64, %c0_65] : memref<32x2xf32, #tpu.memory_space<vmem>>, vector<32x2xf32>
    %cst_66 = arith.constant dense<0.000000e+00> : vector<8x2xf32>
    %595 = tpu.matmul %593, %594, %cst_66 {dimension_numbers = #tpu.dot_dimension_numbers<[1], [0], [0], [1], [0, 0, 1, 1], [], []>} : vector<8x32xf32>, vector<32x2xf32>, vector<8x2xf32> -> vector<8x2xf32>
    %c0_67 = arith.constant 0 : index
    %c0_68 = arith.constant 0 : index
    %596 = vector.load %arg11[%c0_67, %c0_68] : memref<1x2xf32, #tpu.memory_space<vmem>>, vector<1x2xf32>
    %597 = vector.broadcast %596 : vector<1x2xf32> to vector<8x2xf32>
    %598 = arith.addf %595, %597 : vector<8x2xf32>
    %c0_69 = arith.constant 0 : index
    %c0_70 = arith.constant 0 : index
    %599 = vector.load %arg12[%c0_69, %c0_70] : memref<8x2xf32, #tpu.memory_space<vmem>>, vector<8x2xf32>
    tpu.vector_store %arg12[%c0_69, %c0_70], %598 {strides = array<i32>} : memref<8x2xf32, #tpu.memory_space<vmem>>, vector<8x2xf32>,
    return
  }
}

</mosaic_0001>

<llo_original>
// kernel: qnet_forward.1
$region0: #{qnet_forward.1}
  #allocation0 [shape = 'u32[]', space=smem, size = 0x4, offset = 0x4, fixed_abs, tag = 'smem constant byte address 0x4 - core index']
  #allocation1 [shape = 'u32[144,128]{1,0:T(1,128)}', space=vmem, size = 0x12000, scoped, tag = 'internal scratch']
  %s0 = inlined_call_operand.vmem [shape: f32[8,24], index: 0, kind: input, shape index: {}]
  %s1 = inlined_call_operand.vmem [shape: f32[64,8], index: 1, kind: input, shape index: {}]
  %s2 = inlined_call_operand.vmem [shape: f32[28,12], index: 2, kind: input, shape index: {}]
  %s3 = inlined_call_operand.vmem [shape: f32[1,12], index: 3, kind: input, shape index: {}]
  %s4 = inlined_call_operand.vmem [shape: f32[8,4], index: 4, kind: input, shape index: {}]
  %s5 = inlined_call_operand.vmem [shape: f32[1,4], index: 5, kind: input, shape index: {}]
  %s6 = inlined_call_operand.vmem [shape: f32[4,4], index: 6, kind: input, shape index: {}]
  %s7 = inlined_call_operand.vmem [shape: f32[1,4], index: 7, kind: input, shape index: {}]
  %s8 = inlined_call_operand.vmem [shape: f32[64,32], index: 8, kind: input, shape index: {}]
  %s9 = inlined_call_operand.vmem [shape: f32[128,96], index: 9, kind: input, shape index: {}]
  %s10 = inlined_call_operand.vmem [shape: f32[32,2], index: 10, kind: input, shape index: {}]
  %s11 = inlined_call_operand.vmem [shape: f32[1,2], index: 11, kind: input, shape index: {}]
  %s12 = inlined_call_operand.vmem [shape: f32[8,2], index: 12, kind: output, shape index: {}]
  %s13 = sld [smem:[#allocation0]]
  $region58: #{qnet_forward.1} parent=0
    _
  %s15 = ssub.s32 1, %s13
  %s16 = scalar_select 0, %s15, %s13
  // Predicated region
  $region2: #{qnet_forward.1} parent=0 // pred_check
    _
  $region3: #{qnet_forward.1} parent=0 // pred_check_branch
    %18 = sbr.rel (0) target = $region5
  $region4: #{qnet_forward.1} parent=0 // pred_region
    _
  $region5: #{qnet_forward.1} parent=0 // pred_fallthru
    _
  // Predicated region
  $region6: #{qnet_forward.1} parent=0 // pred_check
    _
  $region7: #{qnet_forward.1} parent=0 // pred_check_branch
    %20 = sbr.rel (0) target = $region9
  $region8: #{qnet_forward.1} parent=0 // pred_region
    _
  $region9: #{qnet_forward.1} parent=0 // pred_fallthru
    _
  // Predicated region
  $region10: #{qnet_forward.1} parent=0 // pred_check
    _
  $region11: #{qnet_forward.1} parent=0 // pred_check_branch
    %22 = sbr.rel (0) target = $region13
  $region12: #{qnet_forward.1} parent=0 // pred_region
    _
  $region13: #{qnet_forward.1} parent=0 // pred_fallthru
    _
  // Predicated region
  $region14: #{qnet_forward.1} parent=0 // pred_check
    _
  $region15: #{qnet_forward.1} parent=0 // pred_check_branch
    %24 = sbr.rel (0) target = $region17
  $region16: #{qnet_forward.1} parent=0 // pred_region
    _
  $region17: #{qnet_forward.1} parent=0 // pred_fallthru
    _
  // Predicated region
  $region18: #{qnet_forward.1} parent=0 // pred_check
    _
  $region19: #{qnet_forward.1} parent=0 // pred_check_branch
    %26 = sbr.rel (0) target = $region21
  $region20: #{qnet_forward.1} parent=0 // pred_region
    _
  $region21: #{qnet_forward.1} parent=0 // pred_fallthru
    _
  // Predicated region
  $region22: #{qnet_forward.1} parent=0 // pred_check
    _
  $region23: #{qnet_forward.1} parent=0 // pred_check_branch
    %28 = sbr.rel (0) target = $region25
  $region24: #{qnet_forward.1} parent=0 // pred_region
    _
  $region25: #{qnet_forward.1} parent=0 // pred_fallthru
    _
  // Predicated region
  $region26: #{qnet_forward.1} parent=0 // pred_check
    _
  $region27: #{qnet_forward.1} parent=0 // pred_check_branch
    %30 = sbr.rel (0) target = $region29
  $region28: #{qnet_forward.1} parent=0 // pred_region
    _
  $region29: #{qnet_forward.1} parent=0 // pred_fallthru
    _
  // Predicated region
  $region30: #{qnet_forward.1} parent=0 // pred_check
    _
  $region31: #{qnet_forward.1} parent=0 // pred_check_branch
    %32 = sbr.rel (0) target = $region33
  $region32: #{qnet_forward.1} parent=0 // pred_region
    _
  $region33: #{qnet_forward.1} parent=0 // pred_fallthru
    _
  // Predicated region
  $region34: #{qnet_forward.1} parent=0 // pred_check
    _
  $region35: #{qnet_forward.1} parent=0 // pred_check_branch
    %34 = sbr.rel (0) target = $region37
  $region36: #{qnet_forward.1} parent=0 // pred_region
    _
  $region37: #{qnet_forward.1} parent=0 // pred_fallthru
    _
  // Predicated region
  $region38: #{qnet_forward.1} parent=0 // pred_check
    _
  $region39: #{qnet_forward.1} parent=0 // pred_check_branch
    %36 = sbr.rel (0) target = $region41
  $region40: #{qnet_forward.1} parent=0 // pred_region
    _
  $region41: #{qnet_forward.1} parent=0 // pred_fallthru
    _
  // Predicated region
  $region42: #{qnet_forward.1} parent=0 // pred_check
    _
  $region43: #{qnet_forward.1} parent=0 // pred_check_branch
    %38 = sbr.rel (0) target = $region45
  $region44: #{qnet_forward.1} parent=0 // pred_region
    _
  $region45: #{qnet_forward.1} parent=0 // pred_fallthru
    _
  // Predicated region
  $region46: #{qnet_forward.1} parent=0 // pred_check
    _
  $region47: #{qnet_forward.1} parent=0 // pred_check_branch
    %40 = sbr.rel (0) target = $region49
  $region48: #{qnet_forward.1} parent=0 // pred_region
    _
  $region49: #{qnet_forward.1} parent=0 // pred_fallthru
    _
  %v41 = vld [vmem:[%s1] sm:$0xff]
  %v42 = vld [vmem:[%s1 + $0x8] sm:$0xff]
  %v43 = vld [vmem:[%s1 + $0x10] sm:$0xff]
  %v44 = vld [vmem:[%s1 + $0x18] sm:$0xff]
  %v45 = vld [vmem:[%s1 + $0x20] sm:$0xff]
  %v46 = vld [vmem:[%s1 + $0x28] sm:$0xff]
  %v47 = vld [vmem:[%s1 + $0x30] sm:$0xff]
  %v48 = vld [vmem:[%s1 + $0x38] sm:$0xff]
  %v49 = vld [vmem:[%s4] sm:$0xff]
  %v50 = vld [vmem:[%s5] sm:$0x1]
  %v52 = vlaneseq
  %v53 = vshrl.u32 %v52, 7
  %v54 = vsub.s32 0, %v53
  %v55 = vrot.slane %v50, %v54
  %vm57 = vcmask 64512
  %v59 = vsel %vm57, %v41, 0
  %v62 = vsel %vm57, %v42, 0
  %v65 = vsel %vm57, %v43, 0
  %v68 = vsel %vm57, %v44, 0
  %v71 = vsel %vm57, %v45, 0
  %v74 = vsel %vm57, %v46, 0
  %v77 = vsel %vm57, %v47, 0
  %v80 = vsel %vm57, %v48, 0
  %82 = vmatprep.subr.mxu0 0.0
  %83 = vmatpush1.msra.mxu0 %v49
  %84 = vmatprep.subr.mxu0 0.0
  %85 = vmatpush1.msra.mxu0 0.0
  %86 = vmatprep.subr.mxu0 0.0
  %87 = vmatpush1.msra.mxu0 0.0
  %88 = vmatprep.subr.mxu0 0.0
  %89 = vmatpush1.msra.mxu0 0.0
  %90 = vmatprep.subr.mxu0 0.0
  %91 = vmatpush1.msra.mxu0 0.0
  %92 = vmatprep.subr.mxu0 0.0
  %93 = vmatpush1.msra.mxu0 0.0
  %94 = vmatprep.subr.mxu0 0.0
  %95 = vmatpush1.msra.mxu0 0.0
  %96 = vmatprep.subr.mxu0 0.0
  %97 = vmatpush1.msra.mxu0 0.0
  %98 = vmatprep.subr.mxu0 0.0
  %99 = vmatpush1.msra.mxu0 0.0
  %100 = vmatprep.subr.mxu0 0.0
  %101 = vmatpush1.msra.mxu0 0.0
  %102 = vmatprep.subr.mxu0 0.0
  %103 = vmatpush1.msra.mxu0 0.0
  %104 = vmatprep.subr.mxu0 0.0
  %105 = vmatpush1.msra.mxu0 0.0
  %106 = vmatprep.subr.mxu0 0.0
  %107 = vmatpush1.msra.mxu0 0.0
  %108 = vmatprep.subr.mxu0 0.0
  %109 = vmatpush1.msra.mxu0 0.0
  %110 = vmatprep.subr.mxu0 0.0
  %111 = vmatpush1.msra.mxu0 0.0
  %112 = vmatprep.subr.mxu0 0.0
  %113 = vmatpush1.msra.mxu0 0.0
  %114 = vmatprep.subr.mxu0 0.0
  %115 = vmatpush1.msra.mxu0 0.0
  %116 = vmatprep.subr.mxu0 0.0
  %117 = vmatpush1.msra.mxu0 0.0
  %118 = vmatprep.subr.mxu0 0.0
  %119 = vmatpush1.msra.mxu0 0.0
  %120 = vmatprep.subr.mxu0 0.0
  %121 = vmatpush1.msra.mxu0 0.0
  %122 = vmatprep.subr.mxu0 0.0
  %123 = vmatpush1.msra.mxu0 0.0
  %124 = vmatprep.subr.mxu0 0.0
  %125 = vmatpush1.msra.mxu0 0.0
  %126 = vmatprep.subr.mxu0 0.0
  %127 = vmatpush1.msra.mxu0 0.0
  %128 = vmatprep.subr.mxu0 0.0
  %129 = vmatpush1.msra.mxu0 0.0
  %130 = vmatprep.subr.mxu0 0.0
  %131 = vmatpush1.msra.mxu0 0.0
  %132 = vmatprep.subr.mxu0 0.0
  %133 = vmatpush1.msra.mxu0 0.0
  %134 = vmatprep.subr.mxu0 0.0
  %135 = vmatpush1.msra.mxu0 0.0
  %136 = vmatprep.subr.mxu0 0.0
  %137 = vmatpush1.msra.mxu0 0.0
  %138 = vmatprep.subr.mxu0 0.0
  %139 = vmatpush1.msra.mxu0 0.0
  %140 = vmatprep.subr.mxu0 0.0
  %141 = vmatpush1.msra.mxu0 0.0
  %142 = vmatprep.subr.mxu0 0.0
  %143 = vmatpush1.msra.mxu0 0.0
  %144 = vmatprep.subr.mxu0 0.0
  %145 = vmatpush1.msra.mxu0 0.0
  %146 = vmatprep.mubr.f32.mxu0 0.0
  %147 = vmatmul.mubr.f32.gmra.mrb[0].mxu0 %v59
  %v148 = vpop.f32.mrb[0].mxu0
  %v149 = vadd.f32 %v55, %v148
  %v150 = vpop.f32.mrb[0].mxu0
  %151 = vmatprep.mubr.f32.mxu0 0.0
  %152 = vmatmul.mubr.f32.gmra.mrb[0].mxu0 %v62
  %v153 = vpop.f32.mrb[0].mxu0
  %v154 = vadd.f32 %v55, %v153
  %v155 = vpop.f32.mrb[0].mxu0
  %156 = vmatprep.mubr.f32.mxu0 0.0
  %157 = vmatmul.mubr.f32.gmra.mrb[0].mxu0 %v65
  %v158 = vpop.f32.mrb[0].mxu0
  %v159 = vadd.f32 %v55, %v158
  %v160 = vpop.f32.mrb[0].mxu0
  %161 = vmatprep.mubr.f32.mxu0 0.0
  %162 = vmatmul.mubr.f32.gmra.mrb[0].mxu0 %v68
  %v163 = vpop.f32.mrb[0].mxu0
  %v164 = vadd.f32 %v55, %v163
  %v165 = vpop.f32.mrb[0].mxu0
  %166 = vmatprep.mubr.f32.mxu0 0.0
  %167 = vmatmul.mubr.f32.gmra.mrb[0].mxu0 %v71
  %v168 = vpop.f32.mrb[0].mxu0
  %v169 = vadd.f32 %v55, %v168
  %v170 = vpop.f32.mrb[0].mxu0
  %171 = vmatprep.mubr.f32.mxu0 0.0
  %172 = vmatmul.mubr.f32.gmra.mrb[0].mxu0 %v74
  %v173 = vpop.f32.mrb[0].mxu0
  %v174 = vadd.f32 %v55, %v173
  %v175 = vpop.f32.mrb[0].mxu0
  %176 = vmatprep.mubr.f32.mxu0 0.0
  %177 = vmatmul.mubr.f32.gmra.mrb[0].mxu0 %v77
  %v178 = vpop.f32.mrb[0].mxu0
  %v179 = vadd.f32 %v55, %v178
  %v180 = vpop.f32.mrb[0].mxu0
  %181 = vmatprep.mubr.f32.mxu0 0.0
  %182 = vmatmul.mubr.f32.gmra.mrb[0].mxu0 %v80
  %v183 = vpop.f32.mrb[0].mxu0
  %v184 = vadd.f32 %v55, %v183
  %v185 = vpop.f32.mrb[0].mxu0
  %186 = vdwg.mxu0
  %v187 = vld [vmem:[%s6] sm:$0x1]
  %v188 = vld [vmem:[%s6 + $0x1] sm:$0x1]
  %v189 = vld [vmem:[%s6 + $0x2] sm:$0x1]
  %v190 = vld [vmem:[%s6 + $0x3] sm:$0x1]
  %v191 = vld [vmem:[%s7] sm:$0x1]
  %v193 = vlaneseq
  %v194 = vshrl.u32 %v193, 7
  %v195 = vsub.s32 0, %v194
  %v196 = vrot.slane %v191, %v195
  %v198 = vadd.f32 %v149, %v196
  %v199 = vlaneseq
  %v200 = vshrl.u32 %v199, 7
  %v201 = vsub.s32 0, %v200
  %v202 = vrot.slane %v187, %v201
  %v203 = vmul.f32 %v202, 0.0
  %v204 = vadd.f32 %v198, %v203
  %v205 = vlaneseq
  %v206 = vshrl.u32 %v205, 7
  %v207 = vsub.s32 0, %v206
  %v208 = vrot.slane %v188, %v207
  %v209 = vmul.f32 %v208, 0.0
  %v210 = vadd.f32 %v204, %v209
  %v211 = vlaneseq
  %v212 = vshrl.u32 %v211, 7
  %v213 = vsub.s32 0, %v212
  %v214 = vrot.slane %v189, %v213
  %v215 = vmul.f32 %v214, 0.0
  %v216 = vadd.f32 %v210, %v215
  %v217 = vlaneseq
  %v218 = vshrl.u32 %v217, 7
  %v219 = vsub.s32 0, %v218
  %v220 = vrot.slane %v190, %v219
  %v221 = vmul.f32 %v220, 0.0
  %v222 = vadd.f32 %v216, %v221
  %v223 = vtanh.pop %v222
  %v224 = vadd.f32 %v154, %v196
  %226 = vset.pattern.permute.xlu0 0
  %227 = vperm.xlu0 %226, %v223
  %v228 = vpop.permute.xlu0 %227
  %v230 = vmul.f32 %v228, %v202
  %v231 = vadd.f32 %v224, %v230
  %232 = vset.pattern.permute.xlu0 1
  %233 = vperm.xlu0 %232, %v223
  %v234 = vpop.permute.xlu0 %233
  %v236 = vmul.f32 %v234, %v208
  %v237 = vadd.f32 %v231, %v236
  %238 = vset.pattern.permute.xlu0 2
  %239 = vperm.xlu0 %238, %v223
  %v240 = vpop.permute.xlu0 %239
  %v242 = vmul.f32 %v240, %v214
  %v243 = vadd.f32 %v237, %v242
  %244 = vset.pattern.permute.xlu0 3
  %245 = vperm.xlu0 %244, %v223
  %v246 = vpop.permute.xlu0 %245
  %v248 = vmul.f32 %v246, %v220
  %v249 = vadd.f32 %v243, %v248
  %v250 = vtanh.pop %v249
  %v251 = vadd.f32 %v159, %v196
  %253 = vset.pattern.permute.xlu0 0
  %254 = vperm.xlu0 %253, %v250
  %v255 = vpop.permute.xlu0 %254
  %v257 = vmul.f32 %v255, %v202
  %v258 = vadd.f32 %v251, %v257
  %259 = vset.pattern.permute.xlu0 1
  %260 = vperm.xlu0 %259, %v250
  %v261 = vpop.permute.xlu0 %260
  %v263 = vmul.f32 %v261, %v208
  %v264 = vadd.f32 %v258, %v263
  %265 = vset.pattern.permute.xlu0 2
  %266 = vperm.xlu0 %265, %v250
  %v267 = vpop.permute.xlu0 %266
  %v269 = vmul.f32 %v267, %v214
  %v270 = vadd.f32 %v264, %v269
  %271 = vset.pattern.permute.xlu0 3
  %272 = vperm.xlu0 %271, %v250
  %v273 = vpop.permute.xlu0 %272
  %v275 = vmul.f32 %v273, %v220
  %v276 = vadd.f32 %v270, %v275
  %v277 = vtanh.pop %v276
  %v278 = vadd.f32 %v164, %v196
  %280 = vset.pattern.permute.xlu0 0
  %281 = vperm.xlu0 %280, %v277
  %v282 = vpop.permute.xlu0 %281
  %v284 = vmul.f32 %v282, %v202
  %v285 = vadd.f32 %v278, %v284
  %286 = vset.pattern.permute.xlu0 1
  %287 = vperm.xlu0 %286, %v277
  %v288 = vpop.permute.xlu0 %287
  %v290 = vmul.f32 %v288, %v208
  %v291 = vadd.f32 %v285, %v290
  %292 = vset.pattern.permute.xlu0 2
  %293 = vperm.xlu0 %292, %v277
  %v294 = vpop.permute.xlu0 %293
  %v296 = vmul.f32 %v294, %v214
  %v297 = vadd.f32 %v291, %v296
  %298 = vset.pattern.permute.xlu0 3
  %299 = vperm.xlu0 %298, %v277
  %v300 = vpop.permute.xlu0 %299
  %v302 = vmul.f32 %v300, %v220
  %v303 = vadd.f32 %v297, %v302
  %v304 = vtanh.pop %v303
  %v305 = vadd.f32 %v169, %v196
  %307 = vset.pattern.permute.xlu0 0
  %308 = vperm.xlu0 %307, %v304
  %v309 = vpop.permute.xlu0 %308
  %v311 = vmul.f32 %v309, %v202
  %v312 = vadd.f32 %v305, %v311
  %313 = vset.pattern.permute.xlu0 1
  %314 = vperm.xlu0 %313, %v304
  %v315 = vpop.permute.xlu0 %314
  %v317 = vmul.f32 %v315, %v208
  %v318 = vadd.f32 %v312, %v317
  %319 = vset.pattern.permute.xlu0 2
  %320 = vperm.xlu0 %319, %v304
  %v321 = vpop.permute.xlu0 %320
  %v323 = vmul.f32 %v321, %v214
  %v324 = vadd.f32 %v318, %v323
  %325 = vset.pattern.permute.xlu0 3
  %326 = vperm.xlu0 %325, %v304
  %v327 = vpop.permute.xlu0 %326
  %v329 = vmul.f32 %v327, %v220
  %v330 = vadd.f32 %v324, %v329
  %v331 = vtanh.pop %v330
  %v332 = vadd.f32 %v174, %v196
  %334 = vset.pattern.permute.xlu0 0
  %335 = vperm.xlu0 %334, %v331
  %v336 = vpop.permute.xlu0 %335
  %v338 = vmul.f32 %v336, %v202
  %v339 = vadd.f32 %v332, %v338
  %340 = vset.pattern.permute.xlu0 1
  %341 = vperm.xlu0 %340, %v331
  %v342 = vpop.permute.xlu0 %341
  %v344 = vmul.f32 %v342, %v208
  %v345 = vadd.f32 %v339, %v344
  %346 = vset.pattern.permute.xlu0 2
  %347 = vperm.xlu0 %346, %v331
  %v348 = vpop.permute.xlu0 %347
  %v350 = vmul.f32 %v348, %v214
  %v351 = vadd.f32 %v345, %v350
  %352 = vset.pattern.permute.xlu0 3
  %353 = vperm.xlu0 %352, %v331
  %v354 = vpop.permute.xlu0 %353
  %v356 = vmul.f32 %v354, %v220
  %v357 = vadd.f32 %v351, %v356
  %v358 = vtanh.pop %v357
  %v359 = vadd.f32 %v179, %v196
  %361 = vset.pattern.permute.xlu0 0
  %362 = vperm.xlu0 %361, %v358
  %v363 = vpop.permute.xlu0 %362
  %v365 = vmul.f32 %v363, %v202
  %v366 = vadd.f32 %v359, %v365
  %367 = vset.pattern.permute.xlu0 1
  %368 = vperm.xlu0 %367, %v358
  %v369 = vpop.permute.xlu0 %368
  %v371 = vmul.f32 %v369, %v208
  %v372 = vadd.f32 %v366, %v371
  %373 = vset.pattern.permute.xlu0 2
  %374 = vperm.xlu0 %373, %v358
  %v375 = vpop.permute.xlu0 %374
  %v377 = vmul.f32 %v375, %v214
  %v378 = vadd.f32 %v372, %v377
  %379 = vset.pattern.permute.xlu0 3
  %380 = vperm.xlu0 %379, %v358
  %v381 = vpop.permute.xlu0 %380
  %v383 = vmul.f32 %v381, %v220
  %v384 = vadd.f32 %v378, %v383
  %v385 = vtanh.pop %v384
  %v386 = vadd.f32 %v184, %v196
  %388 = vset.pattern.permute.xlu0 0
  %389 = vperm.xlu0 %388, %v385
  %v390 = vpop.permute.xlu0 %389
  %v392 = vmul.f32 %v390, %v202
  %v393 = vadd.f32 %v386, %v392
  %394 = vset.pattern.permute.xlu0 1
  %395 = vperm.xlu0 %394, %v385
  %v396 = vpop.permute.xlu0 %395
  %v398 = vmul.f32 %v396, %v208
  %v399 = vadd.f32 %v393, %v398
  %400 = vset.pattern.permute.xlu0 2
  %401 = vperm.xlu0 %400, %v385
  %v402 = vpop.permute.xlu0 %401
  %v404 = vmul.f32 %v402, %v214
  %v405 = vadd.f32 %v399, %v404
  %406 = vset.pattern.permute.xlu0 3
  %407 = vperm.xlu0 %406, %v385
  %v408 = vpop.permute.xlu0 %407
  %v410 = vmul.f32 %v408, %v220
  %v411 = vadd.f32 %v405, %v410
  %v412 = vtanh.pop %v411
  %v413 = vld [vmem:[%s0] sm:$0xff]
  %415 = vrot.lane.b32.xlu0 %v412, 24
  %v416 = vpop.permute.xlu0 %415
  %vm418 = vcmask 195584
  %v419 = vsel %vm418, %v413, %v416
  %v420 = vld [vmem:[%s2] sm:$0xff]
  %v421 = vld [vmem:[%s2 + $0x8] sm:$0xff]
  %v422 = vld [vmem:[%s2 + $0x10] sm:$0xff]
  %v423 = vld [vmem:[%s2 + $0x18] sm:$0xf]
  %v424 = vld [vmem:[%s3] sm:$0x1]
  %v426 = vlaneseq
  %v427 = vshrl.u32 %v426, 7
  %v428 = vsub.s32 0, %v427
  %v429 = vrot.slane %v424, %v428
  %vm431 = vcmask 228352
  %v433 = vsel %vm431, %v419, 0
  %vm435 = vcmask 1043456
  %v437 = vsel %vm435, %v423, 0
  %439 = vmatprep.subr.mxu0 0.0
  %440 = vmatpush1.msra.mxu0 %v420
  %441 = vmatprep.subr.mxu0 0.0
  %442 = vmatpush1.msra.mxu0 %v421
  %443 = vmatprep.subr.mxu0 0.0
  %444 = vmatpush1.msra.mxu0 %v422
  %445 = vmatprep.subr.mxu0 0.0
  %446 = vmatpush1.msra.mxu0 %v437
  %447 = vmatprep.subr.mxu0 0.0
  %448 = vmatpush1.msra.mxu0 0.0
  %449 = vmatprep.subr.mxu0 0.0
  %450 = vmatpush1.msra.mxu0 0.0
  %451 = vmatprep.subr.mxu0 0.0
  %452 = vmatpush1.msra.mxu0 0.0
  %453 = vmatprep.subr.mxu0 0.0
  %454 = vmatpush1.msra.mxu0 0.0
  %455 = vmatprep.subr.mxu0 0.0
  %456 = vmatpush1.msra.mxu0 0.0
  %457 = vmatprep.subr.mxu0 0.0
  %458 = vmatpush1.msra.mxu0 0.0
  %459 = vmatprep.subr.mxu0 0.0
  %460 = vmatpush1.msra.mxu0 0.0
  %461 = vmatprep.subr.mxu0 0.0
  %462 = vmatpush1.msra.mxu0 0.0
  %463 = vmatprep.subr.mxu0 0.0
  %464 = vmatpush1.msra.mxu0 0.0
  %465 = vmatprep.subr.mxu0 0.0
  %466 = vmatpush1.msra.mxu0 0.0
  %467 = vmatprep.subr.mxu0 0.0
  %468 = vmatpush1.msra.mxu0 0.0
  %469 = vmatprep.subr.mxu0 0.0
  %470 = vmatpush1.msra.mxu0 0.0
  %471 = vmatprep.subr.mxu0 0.0
  %472 = vmatpush1.msra.mxu0 0.0
  %473 = vmatprep.subr.mxu0 0.0
  %474 = vmatpush1.msra.mxu0 0.0
  %475 = vmatprep.subr.mxu0 0.0
  %476 = vmatpush1.msra.mxu0 0.0
  %477 = vmatprep.subr.mxu0 0.0
  %478 = vmatpush1.msra.mxu0 0.0
  %479 = vmatprep.subr.mxu0 0.0
  %480 = vmatpush1.msra.mxu0 0.0
  %481 = vmatprep.subr.mxu0 0.0
  %482 = vmatpush1.msra.mxu0 0.0
  %483 = vmatprep.subr.mxu0 0.0
  %484 = vmatpush1.msra.mxu0 0.0
  %485 = vmatprep.subr.mxu0 0.0
  %486 = vmatpush1.msra.mxu0 0.0
  %487 = vmatprep.subr.mxu0 0.0
  %488 = vmatpush1.msra.mxu0 0.0
  %489 = vmatprep.subr.mxu0 0.0
  %490 = vmatpush1.msra.mxu0 0.0
  %491 = vmatprep.subr.mxu0 0.0
  %492 = vmatpush1.msra.mxu0 0.0
  %493 = vmatprep.subr.mxu0 0.0
  %494 = vmatpush1.msra.mxu0 0.0
  %495 = vmatprep.subr.mxu0 0.0
  %496 = vmatpush1.msra.mxu0 0.0
  %497 = vmatprep.subr.mxu0 0.0
  %498 = vmatpush1.msra.mxu0 0.0
  %499 = vmatprep.subr.mxu0 0.0
  %500 = vmatpush1.msra.mxu0 0.0
  %501 = vmatprep.subr.mxu0 0.0
  %502 = vmatpush1.msra.mxu0 0.0
  %503 = vmatprep.mubr.f32.mxu0 0.0
  %504 = vmatmul.mubr.f32.gmra.mrb[0].mxu0 %v433
  %v505 = vpop.f32.mrb[0].mxu0
  %v506 = vadd.f32 %v429, %v505
  %v507 = vpop.f32.mrb[0].mxu0
  %508 = vdwg.mxu0
  %v509 = vxor.u32 %v506, 2147483648
  %v510 = vmul.f32 %v509, 1.442695
  %v511 = vpow.pop %v510
  %v512 = vadd.f32 %v511, 1.0
  %v513 = vrcp.pop %v512
  %v514 = vmul.f32 1.0, %v513
  %v515 = vmul.f32 %v514, 3.1415927
  %v516 = vmul.f32 %v515, 0.5
  %518 = vrot.lane.b32.xlu0 %v515, 120
  %v519 = vpop.permute.xlu0 %518
  %v521 = vadd.f32 %v515, %v519
  %v522 = vmul.f32 %v521, 0.5
  %v523 = vsub.f32 %v515, %v519
  %v524 = vmul.f32 %v523, 0.5
  %526 = vrot.lane.b32.xlu0 %v516, 124
  %v527 = vpop.permute.xlu0 %526
  %530 = vrot.lane.b32.xlu0 %v522, 4
  %v531 = vpop.permute.xlu0 %530
  %534 = vrot.lane.b32.xlu0 %v524, 8
  %v535 = vpop.permute.xlu0 %534
  %vm537 = vcmask 31744
  %v538 = vsel %vm537, %v527, %v531
  %v539 = vsel %vm57, %v538, %v535
  %v540 = vand.u32 2147483647, %v539
  %vm541 = vcmp.le.f32.partialorder %v540, 0.7853982
  %vm542 = vcmp.lt.s32.totalorder %v539, 0
  %v543 = vand.u32 %v539, 2139095040
  %v544 = vshrl.u32 %v543, 23
  %v545 = vsub.s32 %v544, 127
  %v546 = vand.u32 2147483647, %v539
  %v547 = vand.u32 %v546, 8388607
  %v548 = vor.u32 %v547, 8388608
  %v549 = vsub.s32 0, %v548
  %v550 = vadd.s32 %v545, 1
  %vm551 = vcmp.gt.s32.totalorder %v550, 0
  %v552 = vsel %vm551, %v550, 0
  %v553 = vshrl.u32 %v552, 5
  %v554 = vand.u32 %v552, 31
  %v555 = vsub.s32 32, %v554
  %v556 = vshrl.u32 683565275, %v555
  %v557 = vshll.u32 683565275, %v554
  %v558 = vshrl.u32 2475754826, %v555
  %v559 = vor.u32 %v557, %v558
  %v560 = vshll.u32 2475754826, %v554
  %v561 = vshrl.u32 2131351028, %v555
  %v562 = vor.u32 %v560, %v561
  %v563 = vshll.u32 2131351028, %v554
  %v564 = vshrl.u32 2102212464, %v555
  %v565 = vor.u32 %v563, %v564
  %v566 = vshll.u32 2102212464, %v554
  %v567 = vshrl.u32 920167782, %v555
  %v568 = vor.u32 %v566, %v567
  %v569 = vshll.u32 920167782, %v554
  %v570 = vshrl.u32 1326507024, %v555
  %v571 = vor.u32 %v569, %v570
  %vm572 = vcmp.lt.s32.totalorder %v553, 1
  %vm573 = vcmp.lt.s32.totalorder %v553, 2
  %vm574 = vcmp.lt.s32.totalorder %v553, 3
  %vm575 = vcmp.lt.s32.totalorder %v553, 4
  %v576 = vsel %vm572, %v556, %v559
  %v577 = vsel %vm575, %v565, 2102212464
  %v578 = vsel %vm574, %v562, %v577
  %v579 = vsel %vm573, %v576, %v578
  %v580 = vsel %vm572, %v559, %v562
  %v581 = vsel %vm575, %v568, 920167782
  %v582 = vsel %vm574, %v565, %v581
  %v583 = vsel %vm573, %v580, %v582
  %v584 = vsel %vm572, %v562, %v565
  %v585 = vsel %vm575, %v571, 1326507024
  %v586 = vsel %vm574, %v568, %v585
  %v587 = vsel %vm573, %v584, %v586
  %v588 = vshll.u32 %v548, 8
  %v589 = vmul.u32.u64.compose %v588, %v587
  %v590 = vextract.low.u32 %v589
  %v591 = vextract.high.u32 %v589
  %v592 = vmul.u32.u64.compose %v588, %v583
  %v593 = vextract.low.u32 %v592
  %v594 = vextract.high.u32 %v592
  %v595 = vmul.u32 %v588, %v579
  %v596 = vadd.s32 %v591, %v593
  %vm597 = vc.u32 %v591, %v593
  %v598 = vadd.s32 %v594, 1
  %v599 = vsel %vm597, %v598, %v594
  %v600 = vadd.s32 %v595, %v599
  %v601 = vadd.s32 %v600, 536870912
  %v602 = vshrl.u32 %v601, 30
  %v603 = vshll.u32 %v602, 30
  %v604 = vsub.s32 %v600, %v603
  %vm605 = vcmp.lt.s32.totalorder %v604, 0
  %v606 = vsub.s32 0, %v604
  %v607 = vsel %vm605, %v606, %v604
  %v608 = vclz %v607
  %v609 = vsub.s32 %v608, 2
  %vm610 = vcmp.gt.s32.totalorder 0, %v609
  %v611 = vsel %vm610, 0, %v609
  %v612 = vsub.s32 32, %v611
  %v613 = vshll.u32 %v604, %v611
  %v614 = vshrl.u32 %v596, %v612
  %v615 = vor.u32 %v613, %v614
  %v616 = vsub.s32 4294967266, %v611
  %v617 = vadd.s32 %v616, 127
  %v618 = vshll.u32 %v617, 23
  %v619 = vor.u32 4788187, %v618
  %v620 = vand.u32 2147483647, %v619
  %v622 = vcvt.s32.f32 %v615
  %v623 = vmul.f32 %v622, %v620
  %v624 = vxor.u32 %v623, 2147483648
  %v625 = vsel %vm542, %v624, %v623
  %v626 = vsub.s32 4, %v602
  %v627 = vsel %vm542, %v626, %v602
  %v628 = vsel %vm541, %v539, %v625
  %v629 = vsel %vm541, 0, %v627
  %v630 = vcosq.f32.pop %v628
  %v631 = vsinq.f32.pop %v628
  %vm632 = vweird.f32 %v539
  %v633 = vand.u32 %v629, 3
  %vm634 = vcmp.lt.s32.totalorder %v633, 2
  %vm635 = vcmp.eq.s32.totalorder %v633, 0
  %v636 = vxor.u32 %v631, 2147483648
  %v637 = vsel %vm635, %v630, %v636
  %vm638 = vcmp.eq.s32.totalorder %v633, 2
  %v639 = vxor.u32 %v630, 2147483648
  %v640 = vsel %vm638, %v639, %v631
  %v641 = vsel %vm634, %v637, %v640
  %v642 = vsel %vm632, nan, %v641
  %v643 = vand.u32 2147483647, %v539
  %vm644 = vcmp.le.f32.partialorder %v643, 0.7853982
  %vm645 = vcmp.lt.s32.totalorder %v539, 0
  %v646 = vand.u32 %v539, 2139095040
  %v647 = vshrl.u32 %v646, 23
  %v648 = vsub.s32 %v647, 127
  %v649 = vand.u32 2147483647, %v539
  %v650 = vand.u32 %v649, 8388607
  %v651 = vor.u32 %v650, 8388608
  %v652 = vsub.s32 0, %v651
  %v653 = vadd.s32 %v648, 1
  %vm654 = vcmp.gt.s32.totalorder %v653, 0
  %v655 = vsel %vm654, %v653, 0
  %v656 = vshrl.u32 %v655, 5
  %v657 = vand.u32 %v655, 31
  %v658 = vsub.s32 32, %v657
  %v659 = vshrl.u32 683565275, %v658
  %v660 = vshll.u32 683565275, %v657
  %v661 = vshrl.u32 2475754826, %v658
  %v662 = vor.u32 %v660, %v661
  %v663 = vshll.u32 2475754826, %v657
  %v664 = vshrl.u32 2131351028, %v658
  %v665 = vor.u32 %v663, %v664
  %v666 = vshll.u32 2131351028, %v657
  %v667 = vshrl.u32 2102212464, %v658
  %v668 = vor.u32 %v666, %v667
  %v669 = vshll.u32 2102212464, %v657
  %v670 = vshrl.u32 920167782, %v658
  %v671 = vor.u32 %v669, %v670
  %v672 = vshll.u32 920167782, %v657
  %v673 = vshrl.u32 1326507024, %v658
  %v674 = vor.u32 %v672, %v673
  %vm675 = vcmp.lt.s32.totalorder %v656, 1
  %vm676 = vcmp.lt.s32.totalorder %v656, 2
  %vm677 = vcmp.lt.s32.totalorder %v656, 3
  %vm678 = vcmp.lt.s32.totalorder %v656, 4
  %v679 = vsel %vm675, %v659, %v662
  %v680 = vsel %vm678, %v668, 2102212464
  %v681 = vsel %vm677, %v665, %v680
  %v682 = vsel %vm676, %v679, %v681
  %v683 = vsel %vm675, %v662, %v665
  %v684 = vsel %vm678, %v671, 920167782
  %v685 = vsel %vm677, %v668, %v684
  %v686 = vsel %vm676, %v683, %v685
  %v687 = vsel %vm675, %v665, %v668
  %v688 = vsel %vm678, %v674, 1326507024
  %v689 = vsel %vm677, %v671, %v688
  %v690 = vsel %vm676, %v687, %v689
  %v691 = vshll.u32 %v651, 8
  %v692 = vmul.u32.u64.compose %v691, %v690
  %v693 = vextract.low.u32 %v692
  %v694 = vextract.high.u32 %v692
  %v695 = vmul.u32.u64.compose %v691, %v686
  %v696 = vextract.low.u32 %v695
  %v697 = vextract.high.u32 %v695
  %v698 = vmul.u32 %v691, %v682
  %v699 = vadd.s32 %v694, %v696
  %vm700 = vc.u32 %v694, %v696
  %v701 = vadd.s32 %v697, 1
  %v702 = vsel %vm700, %v701, %v697
  %v703 = vadd.s32 %v698, %v702
  %v704 = vadd.s32 %v703, 536870912
  %v705 = vshrl.u32 %v704, 30
  %v706 = vshll.u32 %v705, 30
  %v707 = vsub.s32 %v703, %v706
  %vm708 = vcmp.lt.s32.totalorder %v707, 0
  %v709 = vsub.s32 0, %v707
  %v710 = vsel %vm708, %v709, %v707
  %v711 = vclz %v710
  %v712 = vsub.s32 %v711, 2
  %vm713 = vcmp.gt.s32.totalorder 0, %v712
  %v714 = vsel %vm713, 0, %v712
  %v715 = vsub.s32 32, %v714
  %v716 = vshll.u32 %v707, %v714
  %v717 = vshrl.u32 %v699, %v715
  %v718 = vor.u32 %v716, %v717
  %v719 = vsub.s32 4294967266, %v714
  %v720 = vadd.s32 %v719, 127
  %v721 = vshll.u32 %v720, 23
  %v722 = vor.u32 4788187, %v721
  %v723 = vand.u32 2147483647, %v722
  %v725 = vcvt.s32.f32 %v718
  %v726 = vmul.f32 %v725, %v723
  %v727 = vxor.u32 %v726, 2147483648
  %v728 = vsel %vm645, %v727, %v726
  %v729 = vsub.s32 4, %v705
  %v730 = vsel %vm645, %v729, %v705
  %v731 = vsel %vm644, %v539, %v728
  %v732 = vsel %vm644, 0, %v730
  %v733 = vcosq.f32.pop %v731
  %v734 = vsinq.f32.pop %v731
  %vm735 = vweird.f32 %v539
  %v736 = vadd.s32 %v732, 3
  %v737 = vand.u32 %v736, 3
  %vm738 = vcmp.lt.s32.totalorder %v737, 2
  %vm739 = vcmp.eq.s32.totalorder %v737, 0
  %v740 = vxor.u32 %v734, 2147483648
  %v741 = vsel %vm739, %v733, %v740
  %vm742 = vcmp.eq.s32.totalorder %v737, 2
  %v743 = vxor.u32 %v733, 2147483648
  %v744 = vsel %vm742, %v743, %v734
  %v745 = vsel %vm738, %v741, %v744
  %v746 = vsel %vm735, nan, %v745
  %748 = vrot.lane.b32.xlu0 %v642, 4
  %v749 = vpop.permute.xlu0 %748
  %v751 = vmul.f32 %v642, %v749
  %v752 = vsub.f32 0.0, %v746
  %v753 = vmul.f32 %v752, %v749
  %v754 = vsub.f32 0.0, %v642
  %756 = vrot.lane.b32.xlu0 %v746, 8
  %v757 = vpop.permute.xlu0 %756
  %v759 = vmul.f32 %v754, %v757
  %v760 = vmul.f32 %v752, %v757
  %v761 = vmul.f32 %v642, %v757
  %v762 = vmul.f32 %v746, %v749
  %v763 = vlaneseq
  %v764 = vand.u32 %v763, 127
  %v765 = vand.u32 %v764, 15
  %v766 = vshra.s32 %v764, 3
  %v767 = vand.u32 %v766, 1
  %vm768 = vcmp.eq.s32.totalorder %v767, 0
  %v769 = vshra.s32 %v764, 2
  %v770 = vand.u32 %v769, 1
  %vm771 = vcmp.eq.s32.totalorder %v770, 0
  %v772 = vshra.s32 %v764, 1
  %v773 = vand.u32 %v772, 1
  %vm774 = vcmp.eq.s32.totalorder %v773, 0
  %v775 = vand.u32 %v764, 1
  %vm776 = vcmp.eq.s32.totalorder %v775, 0
  %v777 = vshra.s32 %v765, 3
  %v778 = vand.u32 %v777, 1
  %vm779 = vcmp.eq.s32.totalorder %v778, 0
  %v780 = vshra.s32 %v765, 2
  %v781 = vand.u32 %v780, 1
  %vm782 = vcmp.eq.s32.totalorder %v781, 0
  %v783 = vshra.s32 %v765, 1
  %v784 = vand.u32 %v783, 1
  %vm785 = vcmp.eq.s32.totalorder %v784, 0
  %v786 = vand.u32 %v765, 1
  %vm787 = vcmp.eq.s32.totalorder %v786, 0
  %v788 = vsel %vm768, 1, 0
  %vm789 = vcmp.eq.s32.totalorder %v788, 1
  %791 = vset.pattern.permute.xlu0 4
  %792 = vperm.xlu0 %791, %v751
  %v793 = vpop.permute.xlu0 %792
  %796 = vset.pattern.permute.xlu0 8
  %797 = vperm.xlu0 %796, %v761
  %v798 = vpop.permute.xlu0 %797
  %v800 = vsel %vm789, %v793, %v798
  %802 = vset.pattern.permute.xlu0 4
  %803 = vperm.xlu0 %802, %v753
  %v804 = vpop.permute.xlu0 %803
  %807 = vset.pattern.permute.xlu0 8
  %808 = vperm.xlu0 %807, %v760
  %v809 = vpop.permute.xlu0 %808
  %v811 = vsel %vm789, %v804, %v809
  %v812 = vsel %vm771, 1, 0
  %vm813 = vcmp.eq.s32.totalorder %v812, 1
  %814 = vset.pattern.permute.xlu0 5
  %815 = vperm.xlu0 %814, %v751
  %v816 = vpop.permute.xlu0 %815
  %818 = vset.pattern.permute.xlu0 9
  %819 = vperm.xlu0 %818, %v761
  %v820 = vpop.permute.xlu0 %819
  %v822 = vsel %vm813, %v816, %v820
  %823 = vset.pattern.permute.xlu0 5
  %824 = vperm.xlu0 %823, %v753
  %v825 = vpop.permute.xlu0 %824
  %827 = vset.pattern.permute.xlu0 9
  %828 = vperm.xlu0 %827, %v760
  %v829 = vpop.permute.xlu0 %828
  %v831 = vsel %vm813, %v825, %v829
  %v832 = vmul.f32 %v800, %v822
  %v833 = vmul.f32 %v811, %v831
  %v834 = vsub.f32 %v832, %v833
  %v835 = vmul.f32 %v800, %v831
  %v836 = vmul.f32 %v811, %v822
  %v837 = vadd.f32 %v835, %v836
  %v838 = vsel %vm774, 1, 0
  %vm839 = vcmp.eq.s32.totalorder %v838, 1
  %840 = vset.pattern.permute.xlu0 6
  %841 = vperm.xlu0 %840, %v751
  %v842 = vpop.permute.xlu0 %841
  %844 = vset.pattern.permute.xlu0 10
  %845 = vperm.xlu0 %844, %v761
  %v846 = vpop.permute.xlu0 %845
  %v848 = vsel %vm839, %v842, %v846
  %849 = vset.pattern.permute.xlu0 6
  %850 = vperm.xlu0 %849, %v753
  %v851 = vpop.permute.xlu0 %850
  %853 = vset.pattern.permute.xlu0 10
  %854 = vperm.xlu0 %853, %v760
  %v855 = vpop.permute.xlu0 %854
  %v857 = vsel %vm839, %v851, %v855
  %v858 = vmul.f32 %v834, %v848
  %v859 = vmul.f32 %v837, %v857
  %v860 = vsub.f32 %v858, %v859
  %v861 = vmul.f32 %v834, %v857
  %v862 = vmul.f32 %v837, %v848
  %v863 = vadd.f32 %v861, %v862
  %v864 = vsel %vm776, 1, 0
  %vm865 = vcmp.eq.s32.totalorder %v864, 1
  %866 = vset.pattern.permute.xlu0 7
  %867 = vperm.xlu0 %866, %v751
  %v868 = vpop.permute.xlu0 %867
  %870 = vset.pattern.permute.xlu0 11
  %871 = vperm.xlu0 %870, %v761
  %v872 = vpop.permute.xlu0 %871
  %v874 = vsel %vm865, %v868, %v872
  %875 = vset.pattern.permute.xlu0 7
  %876 = vperm.xlu0 %875, %v753
  %v877 = vpop.permute.xlu0 %876
  %879 = vset.pattern.permute.xlu0 11
  %880 = vperm.xlu0 %879, %v760
  %v881 = vpop.permute.xlu0 %880
  %v883 = vsel %vm865, %v877, %v881
  %v884 = vmul.f32 %v860, %v874
  %v885 = vmul.f32 %v863, %v883
  %v886 = vsub.f32 %v884, %v885
  %v887 = vmul.f32 %v860, %v883
  %v888 = vmul.f32 %v863, %v874
  %v889 = vadd.f32 %v887, %v888
  %891 = vrot.lane.b32.xlu0 %v889, 16
  %v892 = vpop.permute.xlu0 %891
  %vm894 = vcmask 130048
  %v895 = vsel %vm894, %v886, %v892
  %v896 = vsel %vm779, 1, 0
  %vm897 = vcmp.eq.s32.totalorder %v896, 1
  %899 = vset.pattern.permute.xlu0 4
  %900 = vperm.xlu0 %899, %v762
  %v901 = vpop.permute.xlu0 %900
  %v903 = vsel %vm897, %v804, %v901
  %905 = vset.pattern.permute.xlu0 8
  %906 = vperm.xlu0 %905, %v759
  %v907 = vpop.permute.xlu0 %906
  %v909 = vsel %vm897, %v907, %v798
  %v910 = vsel %vm782, 1, 0
  %vm911 = vcmp.eq.s32.totalorder %v910, 1
  %912 = vset.pattern.permute.xlu0 5
  %913 = vperm.xlu0 %912, %v762
  %v914 = vpop.permute.xlu0 %913
  %v916 = vsel %vm911, %v825, %v914
  %917 = vset.pattern.permute.xlu0 9
  %918 = vperm.xlu0 %917, %v759
  %v919 = vpop.permute.xlu0 %918
  %v921 = vsel %vm911, %v919, %v820
  %v922 = vsel %vm785, 1, 0
  %vm923 = vcmp.eq.s32.totalorder %v922, 1
  %924 = vset.pattern.permute.xlu0 6
  %925 = vperm.xlu0 %924, %v762
  %v926 = vpop.permute.xlu0 %925
  %v928 = vsel %vm923, %v851, %v926
  %929 = vset.pattern.permute.xlu0 10
  %930 = vperm.xlu0 %929, %v759
  %v931 = vpop.permute.xlu0 %930
  %v933 = vsel %vm923, %v931, %v846
  %v934 = vsel %vm787, 1, 0
  %vm935 = vcmp.eq.s32.totalorder %v934, 1
  %936 = vset.pattern.permute.xlu0 7
  %937 = vperm.xlu0 %936, %v762
  %v938 = vpop.permute.xlu0 %937
  %v940 = vsel %vm935, %v877, %v938
  %941 = vset.pattern.permute.xlu0 11
  %942 = vperm.xlu0 %941, %v759
  %v943 = vpop.permute.xlu0 %942
  %v945 = vsel %vm935, %v943, %v872
  %v946 = vld [vmem:[%s8] sm:$0xff]
  %v947 = vld [vmem:[%s8 + $0x8] sm:$0xff]
  %v948 = vld [vmem:[%s8 + $0x10] sm:$0xff]
  %v949 = vld [vmem:[%s8 + $0x18] sm:$0xff]
  %vm950 = vcmask 261120
  %v952 = vsel %vm950, %v895, 0
  %954 = vmatprep.subr.mxu0 0.0
  %955 = vmatpush1.msra.mxu0 %v946
  %956 = vmatprep.subr.mxu0 0.0
  %957 = vmatpush1.msra.mxu0 %v947
  %958 = vmatprep.subr.mxu0 0.0
  %959 = vmatpush1.msra.mxu0 %v948
  %960 = vmatprep.subr.mxu0 0.0
  %961 = vmatpush1.msra.mxu0 %v949
  %962 = vmatprep.subr.mxu0 0.0
  %963 = vmatpush1.msra.mxu0 0.0
  %964 = vmatprep.subr.mxu0 0.0
  %965 = vmatpush1.msra.mxu0 0.0
  %966 = vmatprep.subr.mxu0 0.0
  %967 = vmatpush1.msra.mxu0 0.0
  %968 = vmatprep.subr.mxu0 0.0
  %969 = vmatpush1.msra.mxu0 0.0
  %970 = vmatprep.subr.mxu0 0.0
  %971 = vmatpush1.msra.mxu0 0.0
  %972 = vmatprep.subr.mxu0 0.0
  %973 = vmatpush1.msra.mxu0 0.0
  %974 = vmatprep.subr.mxu0 0.0
  %975 = vmatpush1.msra.mxu0 0.0
  %976 = vmatprep.subr.mxu0 0.0
  %977 = vmatpush1.msra.mxu0 0.0
  %978 = vmatprep.subr.mxu0 0.0
  %979 = vmatpush1.msra.mxu0 0.0
  %980 = vmatprep.subr.mxu0 0.0
  %981 = vmatpush1.msra.mxu0 0.0
  %982 = vmatprep.subr.mxu0 0.0
  %983 = vmatpush1.msra.mxu0 0.0
  %984 = vmatprep.subr.mxu0 0.0
  %985 = vmatpush1.msra.mxu0 0.0
  %986 = vmatprep.subr.mxu0 0.0
  %987 = vmatpush1.msra.mxu0 0.0
  %988 = vmatprep.subr.mxu0 0.0
  %989 = vmatpush1.msra.mxu0 0.0
  %990 = vmatprep.subr.mxu0 0.0
  %991 = vmatpush1.msra.mxu0 0.0
  %992 = vmatprep.subr.mxu0 0.0
  %993 = vmatpush1.msra.mxu0 0.0
  %994 = vmatprep.subr.mxu0 0.0
  %995 = vmatpush1.msra.mxu0 0.0
  %996 = vmatprep.subr.mxu0 0.0
  %997 = vmatpush1.msra.mxu0 0.0
  %998 = vmatprep.subr.mxu0 0.0
  %999 = vmatpush1.msra.mxu0 0.0
  %1000 = vmatprep.subr.mxu0 0.0
  %1001 = vmatpush1.msra.mxu0 0.0
  %1002 = vmatprep.subr.mxu0 0.0
  %1003 = vmatpush1.msra.mxu0 0.0
  %1004 = vmatprep.subr.mxu0 0.0
  %1005 = vmatpush1.msra.mxu0 0.0
  %1006 = vmatprep.subr.mxu0 0.0
  %1007 = vmatpush1.msra.mxu0 0.0
  %1008 = vmatprep.subr.mxu0 0.0
  %1009 = vmatpush1.msra.mxu0 0.0
  %1010 = vmatprep.subr.mxu0 0.0
  %1011 = vmatpush1.msra.mxu0 0.0
  %1012 = vmatprep.subr.mxu0 0.0
  %1013 = vmatpush1.msra.mxu0 0.0
  %1014 = vmatprep.subr.mxu0 0.0
  %1015 = vmatpush1.msra.mxu0 0.0
  %1016 = vmatprep.subr.mxu0 0.0
  %1017 = vmatpush1.msra.mxu0 0.0
  %1018 = vmatprep.mubr.f32.mxu0 0.0
  %1019 = vmatmul.mubr.f32.gmra.mrb[0].mxu0 %v952
  %v1020 = vpop.f32.mrb[0].mxu0
  %v1021 = vadd.f32 0.0, %v1020
  %v1022 = vpop.f32.mrb[0].mxu0
  %1023 = vdwg.mxu0
  %v1024 = vld [vmem:[%s9] sm:$0xff]
  %v1025 = vld [vmem:[%s9 + $0x8] sm:$0xff]
  %v1026 = vld [vmem:[%s9 + $0x10] sm:$0xff]
  %v1027 = vld [vmem:[%s9 + $0x18] sm:$0xff]
  %v1029 = vsel %vm950, %v1021, 0
  %1031 = vmatprep.subr.mxu0 0.0
  %1032 = vmatpush1.msra.mxu0 %v1024
  %1033 = vmatprep.subr.mxu0 0.0
  %1034 = vmatpush1.msra.mxu0 %v1025
  %1035 = vmatprep.subr.mxu0 0.0
  %1036 = vmatpush1.msra.mxu0 %v1026
  %1037 = vmatprep.subr.mxu0 0.0
  %1038 = vmatpush1.msra.mxu0 %v1027
  %1039 = vmatprep.subr.mxu0 0.0
  %1040 = vmatpush1.msra.mxu0 0.0
  %1041 = vmatprep.subr.mxu0 0.0
  %1042 = vmatpush1.msra.mxu0 0.0
  %1043 = vmatprep.subr.mxu0 0.0
  %1044 = vmatpush1.msra.mxu0 0.0
  %1045 = vmatprep.subr.mxu0 0.0
  %1046 = vmatpush1.msra.mxu0 0.0
  %1047 = vmatprep.subr.mxu0 0.0
  %1048 = vmatpush1.msra.mxu0 0.0
  %1049 = vmatprep.subr.mxu0 0.0
  %1050 = vmatpush1.msra.mxu0 0.0
  %1051 = vmatprep.subr.mxu0 0.0
  %1052 = vmatpush1.msra.mxu0 0.0
  %1053 = vmatprep.subr.mxu0 0.0
  %1054 = vmatpush1.msra.mxu0 0.0
  %1055 = vmatprep.subr.mxu0 0.0
  %1056 = vmatpush1.msra.mxu0 0.0
  %1057 = vmatprep.subr.mxu0 0.0
  %1058 = vmatpush1.msra.mxu0 0.0
  %1059 = vmatprep.subr.mxu0 0.0
  %1060 = vmatpush1.msra.mxu0 0.0
  %1061 = vmatprep.subr.mxu0 0.0
  %1062 = vmatpush1.msra.mxu0 0.0
  %1063 = vmatprep.subr.mxu0 0.0
  %1064 = vmatpush1.msra.mxu0 0.0
  %1065 = vmatprep.subr.mxu0 0.0
  %1066 = vmatpush1.msra.mxu0 0.0
  %1067 = vmatprep.subr.mxu0 0.0
  %1068 = vmatpush1.msra.mxu0 0.0
  %1069 = vmatprep.subr.mxu0 0.0
  %1070 = vmatpush1.msra.mxu0 0.0
  %1071 = vmatprep.subr.mxu0 0.0
  %1072 = vmatpush1.msra.mxu0 0.0
  %1073 = vmatprep.subr.mxu0 0.0
  %1074 = vmatpush1.msra.mxu0 0.0
  %1075 = vmatprep.subr.mxu0 0.0
  %1076 = vmatpush1.msra.mxu0 0.0
  %1077 = vmatprep.subr.mxu0 0.0
  %1078 = vmatpush1.msra.mxu0 0.0
  %1079 = vmatprep.subr.mxu0 0.0
  %1080 = vmatpush1.msra.mxu0 0.0
  %1081 = vmatprep.subr.mxu0 0.0
  %1082 = vmatpush1.msra.mxu0 0.0
  %1083 = vmatprep.subr.mxu0 0.0
  %1084 = vmatpush1.msra.mxu0 0.0
  %1085 = vmatprep.subr.mxu0 0.0
  %1086 = vmatpush1.msra.mxu0 0.0
  %1087 = vmatprep.subr.mxu0 0.0
  %1088 = vmatpush1.msra.mxu0 0.0
  %1089 = vmatprep.subr.mxu0 0.0
  %1090 = vmatpush1.msra.mxu0 0.0
  %1091 = vmatprep.subr.mxu0 0.0
  %1092 = vmatpush1.msra.mxu0 0.0
  %1093 = vmatprep.subr.mxu0 0.0
  %1094 = vmatpush1.msra.mxu0 0.0
  %1095 = vmatprep.mubr.f32.mxu0 0.0
  %1096 = vmatmul.mubr.f32.gmra.mrb[0].mxu0 %v1029
  %v1097 = vpop.f32.mrb[0].mxu0
  %v1098 = vadd.f32 0.0, %v1097
  %v1099 = vpop.f32.mrb[0].mxu0
  %1100 = vdwg.mxu0
  %v1101 = vmul.f32 %v793, %v1021
  %1103 = vrot.lane.b32.xlu0 %v1098, 96
  %v1104 = vpop.permute.xlu0 %1103
  %v1106 = vmul.f32 %v903, %v1104
  %v1107 = vadd.f32 %v1101, %v1106
  %v1108 = vmul.f32 %v909, %v1098
  %v1109 = vadd.f32 %v1107, %v1108
  %v1110 = vmul.f32 %v809, %v1098
  %1112 = vrot.lane.b32.xlu0 %v1110, 64
  %v1113 = vpop.permute.xlu0 %1112
  %v1115 = vadd.f32 %v1109, %v1113
  %v1116 = vld [vmem:[%s9 + $0x20] sm:$0xff]
  %v1117 = vld [vmem:[%s9 + $0x28] sm:$0xff]
  %v1118 = vld [vmem:[%s9 + $0x30] sm:$0xff]
  %v1119 = vld [vmem:[%s9 + $0x38] sm:$0xff]
  %v1121 = vsel %vm950, %v1115, 0
  %1123 = vmatprep.subr.mxu0 0.0
  %1124 = vmatpush1.msra.mxu0 %v1116
  %1125 = vmatprep.subr.mxu0 0.0
  %1126 = vmatpush1.msra.mxu0 %v1117
  %1127 = vmatprep.subr.mxu0 0.0
  %1128 = vmatpush1.msra.mxu0 %v1118
  %1129 = vmatprep.subr.mxu0 0.0
  %1130 = vmatpush1.msra.mxu0 %v1119
  %1131 = vmatprep.subr.mxu0 0.0
  %1132 = vmatpush1.msra.mxu0 0.0
  %1133 = vmatprep.subr.mxu0 0.0
  %1134 = vmatpush1.msra.mxu0 0.0
  %1135 = vmatprep.subr.mxu0 0.0
  %1136 = vmatpush1.msra.mxu0 0.0
  %1137 = vmatprep.subr.mxu0 0.0
  %1138 = vmatpush1.msra.mxu0 0.0
  %1139 = vmatprep.subr.mxu0 0.0
  %1140 = vmatpush1.msra.mxu0 0.0
  %1141 = vmatprep.subr.mxu0 0.0
  %1142 = vmatpush1.msra.mxu0 0.0
  %1143 = vmatprep.subr.mxu0 0.0
  %1144 = vmatpush1.msra.mxu0 0.0
  %1145 = vmatprep.subr.mxu0 0.0
  %1146 = vmatpush1.msra.mxu0 0.0
  %1147 = vmatprep.subr.mxu0 0.0
  %1148 = vmatpush1.msra.mxu0 0.0
  %1149 = vmatprep.subr.mxu0 0.0
  %1150 = vmatpush1.msra.mxu0 0.0
  %1151 = vmatprep.subr.mxu0 0.0
  %1152 = vmatpush1.msra.mxu0 0.0
  %1153 = vmatprep.subr.mxu0 0.0
  %1154 = vmatpush1.msra.mxu0 0.0
  %1155 = vmatprep.subr.mxu0 0.0
  %1156 = vmatpush1.msra.mxu0 0.0
  %1157 = vmatprep.subr.mxu0 0.0
  %1158 = vmatpush1.msra.mxu0 0.0
  %1159 = vmatprep.subr.mxu0 0.0
  %1160 = vmatpush1.msra.mxu0 0.0
  %1161 = vmatprep.subr.mxu0 0.0
  %1162 = vmatpush1.msra.mxu0 0.0
  %1163 = vmatprep.subr.mxu0 0.0
  %1164 = vmatpush1.msra.mxu0 0.0
  %1165 = vmatprep.subr.mxu0 0.0
  %1166 = vmatpush1.msra.mxu0 0.0
  %1167 = vmatprep.subr.mxu0 0.0
  %1168 = vmatpush1.msra.mxu0 0.0
  %1169 = vmatprep.subr.mxu0 0.0
  %1170 = vmatpush1.msra.mxu0 0.0
  %1171 = vmatprep.subr.mxu0 0.0
  %1172 = vmatpush1.msra.mxu0 0.0
  %1173 = vmatprep.subr.mxu0 0.0
  %1174 = vmatpush1.msra.mxu0 0.0
  %1175 = vmatprep.subr.mxu0 0.0
  %1176 = vmatpush1.msra.mxu0 0.0
  %1177 = vmatprep.subr.mxu0 0.0
  %1178 = vmatpush1.msra.mxu0 0.0
  %1179 = vmatprep.subr.mxu0 0.0
  %1180 = vmatpush1.msra.mxu0 0.0
  %1181 = vmatprep.subr.mxu0 0.0
  %1182 = vmatpush1.msra.mxu0 0.0
  %1183 = vmatprep.subr.mxu0 0.0
  %1184 = vmatpush1.msra.mxu0 0.0
  %1185 = vmatprep.subr.mxu0 0.0
  %1186 = vmatpush1.msra.mxu0 0.0
  %1187 = vmatprep.mubr.f32.mxu0 0.0
  %1188 = vmatmul.mubr.f32.gmra.mrb[0].mxu0 %v1121
  %v1189 = vpop.f32.mrb[0].mxu0
  %v1190 = vadd.f32 0.0, %v1189
  %v1191 = vpop.f32.mrb[0].mxu0
  %1192 = vdwg.mxu0
  %v1193 = vmul.f32 %v816, %v1115
  %1195 = vrot.lane.b32.xlu0 %v1190, 96
  %v1196 = vpop.permute.xlu0 %1195
  %v1198 = vmul.f32 %v916, %v1196
  %v1199 = vadd.f32 %v1193, %v1198
  %v1200 = vmul.f32 %v921, %v1190
  %v1201 = vadd.f32 %v1199, %v1200
  %v1202 = vmul.f32 %v829, %v1190
  %1204 = vrot.lane.b32.xlu0 %v1202, 64
  %v1205 = vpop.permute.xlu0 %1204
  %v1207 = vadd.f32 %v1201, %v1205
  %v1208 = vld [vmem:[%s9 + $0x40] sm:$0xff]
  %v1209 = vld [vmem:[%s9 + $0x48] sm:$0xff]
  %v1210 = vld [vmem:[%s9 + $0x50] sm:$0xff]
  %v1211 = vld [vmem:[%s9 + $0x58] sm:$0xff]
  %v1213 = vsel %vm950, %v1207, 0
  %1215 = vmatprep.subr.mxu0 0.0
  %1216 = vmatpush1.msra.mxu0 %v1208
  %1217 = vmatprep.subr.mxu0 0.0
  %1218 = vmatpush1.msra.mxu0 %v1209
  %1219 = vmatprep.subr.mxu0 0.0
  %1220 = vmatpush1.msra.mxu0 %v1210
  %1221 = vmatprep.subr.mxu0 0.0
  %1222 = vmatpush1.msra.mxu0 %v1211
  %1223 = vmatprep.subr.mxu0 0.0
  %1224 = vmatpush1.msra.mxu0 0.0
  %1225 = vmatprep.subr.mxu0 0.0
  %1226 = vmatpush1.msra.mxu0 0.0
  %1227 = vmatprep.subr.mxu0 0.0
  %1228 = vmatpush1.msra.mxu0 0.0
  %1229 = vmatprep.subr.mxu0 0.0
  %1230 = vmatpush1.msra.mxu0 0.0
  %1231 = vmatprep.subr.mxu0 0.0
  %1232 = vmatpush1.msra.mxu0 0.0
  %1233 = vmatprep.subr.mxu0 0.0
  %1234 = vmatpush1.msra.mxu0 0.0
  %1235 = vmatprep.subr.mxu0 0.0
  %1236 = vmatpush1.msra.mxu0 0.0
  %1237 = vmatprep.subr.mxu0 0.0
  %1238 = vmatpush1.msra.mxu0 0.0
  %1239 = vmatprep.subr.mxu0 0.0
  %1240 = vmatpush1.msra.mxu0 0.0
  %1241 = vmatprep.subr.mxu0 0.0
  %1242 = vmatpush1.msra.mxu0 0.0
  %1243 = vmatprep.subr.mxu0 0.0
  %1244 = vmatpush1.msra.mxu0 0.0
  %1245 = vmatprep.subr.mxu0 0.0
  %1246 = vmatpush1.msra.mxu0 0.0
  %1247 = vmatprep.subr.mxu0 0.0
  %1248 = vmatpush1.msra.mxu0 0.0
  %1249 = vmatprep.subr.mxu0 0.0
  %1250 = vmatpush1.msra.mxu0 0.0
  %1251 = vmatprep.subr.mxu0 0.0
  %1252 = vmatpush1.msra.mxu0 0.0
  %1253 = vmatprep.subr.mxu0 0.0
  %1254 = vmatpush1.msra.mxu0 0.0
  %1255 = vmatprep.subr.mxu0 0.0
  %1256 = vmatpush1.msra.mxu0 0.0
  %1257 = vmatprep.subr.mxu0 0.0
  %1258 = vmatpush1.msra.mxu0 0.0
  %1259 = vmatprep.subr.mxu0 0.0
  %1260 = vmatpush1.msra.mxu0 0.0
  %1261 = vmatprep.subr.mxu0 0.0
  %1262 = vmatpush1.msra.mxu0 0.0
  %1263 = vmatprep.subr.mxu0 0.0
  %1264 = vmatpush1.msra.mxu0 0.0
  %1265 = vmatprep.subr.mxu0 0.0
  %1266 = vmatpush1.msra.mxu0 0.0
  %1267 = vmatprep.subr.mxu0 0.0
  %1268 = vmatpush1.msra.mxu0 0.0
  %1269 = vmatprep.subr.mxu0 0.0
  %1270 = vmatpush1.msra.mxu0 0.0
  %1271 = vmatprep.subr.mxu0 0.0
  %1272 = vmatpush1.msra.mxu0 0.0
  %1273 = vmatprep.subr.mxu0 0.0
  %1274 = vmatpush1.msra.mxu0 0.0
  %1275 = vmatprep.subr.mxu0 0.0
  %1276 = vmatpush1.msra.mxu0 0.0
  %1277 = vmatprep.subr.mxu0 0.0
  %1278 = vmatpush1.msra.mxu0 0.0
  %1279 = vmatprep.mubr.f32.mxu0 0.0
  %1280 = vmatmul.mubr.f32.gmra.mrb[0].mxu0 %v1213
  %v1281 = vpop.f32.mrb[0].mxu0
  %v1282 = vadd.f32 0.0, %v1281
  %v1283 = vpop.f32.mrb[0].mxu0
  %1284 = vdwg.mxu0
  %v1285 = vmul.f32 %v842, %v1207
  %1287 = vrot.lane.b32.xlu0 %v1282, 96
  %v1288 = vpop.permute.xlu0 %1287
  %v1290 = vmul.f32 %v928, %v1288
  %v1291 = vadd.f32 %v1285, %v1290
  %v1292 = vmul.f32 %v933, %v1282
  %v1293 = vadd.f32 %v1291, %v1292
  %v1294 = vmul.f32 %v855, %v1282
  %1296 = vrot.lane.b32.xlu0 %v1294, 64
  %v1297 = vpop.permute.xlu0 %1296
  %v1299 = vadd.f32 %v1293, %v1297
  %v1300 = vld [vmem:[%s9 + $0x60] sm:$0xff]
  %v1301 = vld [vmem:[%s9 + $0x68] sm:$0xff]
  %v1302 = vld [vmem:[%s9 + $0x70] sm:$0xff]
  %v1303 = vld [vmem:[%s9 + $0x78] sm:$0xff]
  %v1305 = vsel %vm950, %v1299, 0
  %1307 = vmatprep.subr.mxu0 0.0
  %1308 = vmatpush1.msra.mxu0 %v1300
  %1309 = vmatprep.subr.mxu0 0.0
  %1310 = vmatpush1.msra.mxu0 %v1301
  %1311 = vmatprep.subr.mxu0 0.0
  %1312 = vmatpush1.msra.mxu0 %v1302
  %1313 = vmatprep.subr.mxu0 0.0
  %1314 = vmatpush1.msra.mxu0 %v1303
  %1315 = vmatprep.subr.mxu0 0.0
  %1316 = vmatpush1.msra.mxu0 0.0
  %1317 = vmatprep.subr.mxu0 0.0
  %1318 = vmatpush1.msra.mxu0 0.0
  %1319 = vmatprep.subr.mxu0 0.0
  %1320 = vmatpush1.msra.mxu0 0.0
  %1321 = vmatprep.subr.mxu0 0.0
  %1322 = vmatpush1.msra.mxu0 0.0
  %1323 = vmatprep.subr.mxu0 0.0
  %1324 = vmatpush1.msra.mxu0 0.0
  %1325 = vmatprep.subr.mxu0 0.0
  %1326 = vmatpush1.msra.mxu0 0.0
  %1327 = vmatprep.subr.mxu0 0.0
  %1328 = vmatpush1.msra.mxu0 0.0
  %1329 = vmatprep.subr.mxu0 0.0
  %1330 = vmatpush1.msra.mxu0 0.0
  %1331 = vmatprep.subr.mxu0 0.0
  %1332 = vmatpush1.msra.mxu0 0.0
  %1333 = vmatprep.subr.mxu0 0.0
  %1334 = vmatpush1.msra.mxu0 0.0
  %1335 = vmatprep.subr.mxu0 0.0
  %1336 = vmatpush1.msra.mxu0 0.0
  %1337 = vmatprep.subr.mxu0 0.0
  %1338 = vmatpush1.msra.mxu0 0.0
  %1339 = vmatprep.subr.mxu0 0.0
  %1340 = vmatpush1.msra.mxu0 0.0
  %1341 = vmatprep.subr.mxu0 0.0
  %1342 = vmatpush1.msra.mxu0 0.0
  %1343 = vmatprep.subr.mxu0 0.0
  %1344 = vmatpush1.msra.mxu0 0.0
  %1345 = vmatprep.subr.mxu0 0.0
  %1346 = vmatpush1.msra.mxu0 0.0
  %1347 = vmatprep.subr.mxu0 0.0
  %1348 = vmatpush1.msra.mxu0 0.0
  %1349 = vmatprep.subr.mxu0 0.0
  %1350 = vmatpush1.msra.mxu0 0.0
  %1351 = vmatprep.subr.mxu0 0.0
  %1352 = vmatpush1.msra.mxu0 0.0
  %1353 = vmatprep.subr.mxu0 0.0
  %1354 = vmatpush1.msra.mxu0 0.0
  %1355 = vmatprep.subr.mxu0 0.0
  %1356 = vmatpush1.msra.mxu0 0.0
  %1357 = vmatprep.subr.mxu0 0.0
  %1358 = vmatpush1.msra.mxu0 0.0
  %1359 = vmatprep.subr.mxu0 0.0
  %1360 = vmatpush1.msra.mxu0 0.0
  %1361 = vmatprep.subr.mxu0 0.0
  %1362 = vmatpush1.msra.mxu0 0.0
  %1363 = vmatprep.subr.mxu0 0.0
  %1364 = vmatpush1.msra.mxu0 0.0
  %1365 = vmatprep.subr.mxu0 0.0
  %1366 = vmatpush1.msra.mxu0 0.0
  %1367 = vmatprep.subr.mxu0 0.0
  %1368 = vmatpush1.msra.mxu0 0.0
  %1369 = vmatprep.subr.mxu0 0.0
  %1370 = vmatpush1.msra.mxu0 0.0
  %1371 = vmatprep.mubr.f32.mxu0 0.0
  %1372 = vmatmul.mubr.f32.gmra.mrb[0].mxu0 %v1305
  %v1373 = vpop.f32.mrb[0].mxu0
  %v1374 = vadd.f32 0.0, %v1373
  %v1375 = vpop.f32.mrb[0].mxu0
  %1376 = vdwg.mxu0
  %v1377 = vmul.f32 %v868, %v1299
  %1379 = vrot.lane.b32.xlu0 %v1374, 96
  %v1380 = vpop.permute.xlu0 %1379
  %v1382 = vmul.f32 %v940, %v1380
  %v1383 = vadd.f32 %v1377, %v1382
  %v1384 = vmul.f32 %v945, %v1374
  %v1385 = vadd.f32 %v1383, %v1384
  %v1386 = vmul.f32 %v881, %v1374
  %1388 = vrot.lane.b32.xlu0 %v1386, 64
  %v1389 = vpop.permute.xlu0 %1388
  %v1391 = vadd.f32 %v1385, %v1389
  %v1392 = vld [vmem:[%s8 + $0x20] sm:$0xff]
  %v1393 = vld [vmem:[%s8 + $0x28] sm:$0xff]
  %v1394 = vld [vmem:[%s8 + $0x30] sm:$0xff]
  %v1395 = vld [vmem:[%s8 + $0x38] sm:$0xff]
  %v1397 = vsel %vm950, %v1391, 0
  %1399 = vmatprep.subr.mxu0 0.0
  %1400 = vmatpush1.msra.mxu0 %v1392
  %1401 = vmatprep.subr.mxu0 0.0
  %1402 = vmatpush1.msra.mxu0 %v1393
  %1403 = vmatprep.subr.mxu0 0.0
  %1404 = vmatpush1.msra.mxu0 %v1394
  %1405 = vmatprep.subr.mxu0 0.0
  %1406 = vmatpush1.msra.mxu0 %v1395
  %1407 = vmatprep.subr.mxu0 0.0
  %1408 = vmatpush1.msra.mxu0 0.0
  %1409 = vmatprep.subr.mxu0 0.0
  %1410 = vmatpush1.msra.mxu0 0.0
  %1411 = vmatprep.subr.mxu0 0.0
  %1412 = vmatpush1.msra.mxu0 0.0
  %1413 = vmatprep.subr.mxu0 0.0
  %1414 = vmatpush1.msra.mxu0 0.0
  %1415 = vmatprep.subr.mxu0 0.0
  %1416 = vmatpush1.msra.mxu0 0.0
  %1417 = vmatprep.subr.mxu0 0.0
  %1418 = vmatpush1.msra.mxu0 0.0
  %1419 = vmatprep.subr.mxu0 0.0
  %1420 = vmatpush1.msra.mxu0 0.0
  %1421 = vmatprep.subr.mxu0 0.0
  %1422 = vmatpush1.msra.mxu0 0.0
  %1423 = vmatprep.subr.mxu0 0.0
  %1424 = vmatpush1.msra.mxu0 0.0
  %1425 = vmatprep.subr.mxu0 0.0
  %1426 = vmatpush1.msra.mxu0 0.0
  %1427 = vmatprep.subr.mxu0 0.0
  %1428 = vmatpush1.msra.mxu0 0.0
  %1429 = vmatprep.subr.mxu0 0.0
  %1430 = vmatpush1.msra.mxu0 0.0
  %1431 = vmatprep.subr.mxu0 0.0
  %1432 = vmatpush1.msra.mxu0 0.0
  %1433 = vmatprep.subr.mxu0 0.0
  %1434 = vmatpush1.msra.mxu0 0.0
  %1435 = vmatprep.subr.mxu0 0.0
  %1436 = vmatpush1.msra.mxu0 0.0
  %1437 = vmatprep.subr.mxu0 0.0
  %1438 = vmatpush1.msra.mxu0 0.0
  %1439 = vmatprep.subr.mxu0 0.0
  %1440 = vmatpush1.msra.mxu0 0.0
  %1441 = vmatprep.subr.mxu0 0.0
  %1442 = vmatpush1.msra.mxu0 0.0
  %1443 = vmatprep.subr.mxu0 0.0
  %1444 = vmatpush1.msra.mxu0 0.0
  %1445 = vmatprep.subr.mxu0 0.0
  %1446 = vmatpush1.msra.mxu0 0.0
  %1447 = vmatprep.subr.mxu0 0.0
  %1448 = vmatpush1.msra.mxu0 0.0
  %1449 = vmatprep.subr.mxu0 0.0
  %1450 = vmatpush1.msra.mxu0 0.0
  %1451 = vmatprep.subr.mxu0 0.0
  %1452 = vmatpush1.msra.mxu0 0.0
  %1453 = vmatprep.subr.mxu0 0.0
  %1454 = vmatpush1.msra.mxu0 0.0
  %1455 = vmatprep.subr.mxu0 0.0
  %1456 = vmatpush1.msra.mxu0 0.0
  %1457 = vmatprep.subr.mxu0 0.0
  %1458 = vmatpush1.msra.mxu0 0.0
  %1459 = vmatprep.subr.mxu0 0.0
  %1460 = vmatpush1.msra.mxu0 0.0
  %1461 = vmatprep.subr.mxu0 0.0
  %1462 = vmatpush1.msra.mxu0 0.0
  %1463 = vmatprep.mubr.f32.mxu0 0.0
  %1464 = vmatmul.mubr.f32.gmra.mrb[0].mxu0 %v1397
  %v1465 = vpop.f32.mrb[0].mxu0
  %v1466 = vadd.f32 0.0, %v1465
  %v1467 = vpop.f32.mrb[0].mxu0
  %1468 = vdwg.mxu0
  %v1469 = vmul.f32 %v1466, %v1466
  %v1470 = vld [vmem:[%s10] sm:$0xff]
  %v1471 = vld [vmem:[%s10 + $0x8] sm:$0xff]
  %v1472 = vld [vmem:[%s10 + $0x10] sm:$0xff]
  %v1473 = vld [vmem:[%s10 + $0x18] sm:$0xff]
  %v1474 = vld [vmem:[%s11] sm:$0x1]
  %v1476 = vlaneseq
  %v1477 = vshrl.u32 %v1476, 7
  %v1478 = vsub.s32 0, %v1477
  %v1479 = vrot.slane %v1474, %v1478
  %v1482 = vsel %vm950, %v1469, 0
  %1484 = vmatprep.subr.mxu0 0.0
  %1485 = vmatpush1.msra.mxu0 %v1470
  %1486 = vmatprep.subr.mxu0 0.0
  %1487 = vmatpush1.msra.mxu0 %v1471
  %1488 = vmatprep.subr.mxu0 0.0
  %1489 = vmatpush1.msra.mxu0 %v1472
  %1490 = vmatprep.subr.mxu0 0.0
  %1491 = vmatpush1.msra.mxu0 %v1473
  %1492 = vmatprep.subr.mxu0 0.0
  %1493 = vmatpush1.msra.mxu0 0.0
  %1494 = vmatprep.subr.mxu0 0.0
  %1495 = vmatpush1.msra.mxu0 0.0
  %1496 = vmatprep.subr.mxu0 0.0
  %1497 = vmatpush1.msra.mxu0 0.0
  %1498 = vmatprep.subr.mxu0 0.0
  %1499 = vmatpush1.msra.mxu0 0.0
  %1500 = vmatprep.subr.mxu0 0.0
  %1501 = vmatpush1.msra.mxu0 0.0
  %1502 = vmatprep.subr.mxu0 0.0
  %1503 = vmatpush1.msra.mxu0 0.0
  %1504 = vmatprep.subr.mxu0 0.0
  %1505 = vmatpush1.msra.mxu0 0.0
  %1506 = vmatprep.subr.mxu0 0.0
  %1507 = vmatpush1.msra.mxu0 0.0
  %1508 = vmatprep.subr.mxu0 0.0
  %1509 = vmatpush1.msra.mxu0 0.0
  %1510 = vmatprep.subr.mxu0 0.0
  %1511 = vmatpush1.msra.mxu0 0.0
  %1512 = vmatprep.subr.mxu0 0.0
  %1513 = vmatpush1.msra.mxu0 0.0
  %1514 = vmatprep.subr.mxu0 0.0
  %1515 = vmatpush1.msra.mxu0 0.0
  %1516 = vmatprep.subr.mxu0 0.0
  %1517 = vmatpush1.msra.mxu0 0.0
  %1518 = vmatprep.subr.mxu0 0.0
  %1519 = vmatpush1.msra.mxu0 0.0
  %1520 = vmatprep.subr.mxu0 0.0
  %1521 = vmatpush1.msra.mxu0 0.0
  %1522 = vmatprep.subr.mxu0 0.0
  %1523 = vmatpush1.msra.mxu0 0.0
  %1524 = vmatprep.subr.mxu0 0.0
  %1525 = vmatpush1.msra.mxu0 0.0
  %1526 = vmatprep.subr.mxu0 0.0
  %1527 = vmatpush1.msra.mxu0 0.0
  %1528 = vmatprep.subr.mxu0 0.0
  %1529 = vmatpush1.msra.mxu0 0.0
  %1530 = vmatprep.subr.mxu0 0.0
  %1531 = vmatpush1.msra.mxu0 0.0
  %1532 = vmatprep.subr.mxu0 0.0
  %1533 = vmatpush1.msra.mxu0 0.0
  %1534 = vmatprep.subr.mxu0 0.0
  %1535 = vmatpush1.msra.mxu0 0.0
  %1536 = vmatprep.subr.mxu0 0.0
  %1537 = vmatpush1.msra.mxu0 0.0
  %1538 = vmatprep.subr.mxu0 0.0
  %1539 = vmatpush1.msra.mxu0 0.0
  %1540 = vmatprep.subr.mxu0 0.0
  %1541 = vmatpush1.msra.mxu0 0.0
  %1542 = vmatprep.subr.mxu0 0.0
  %1543 = vmatpush1.msra.mxu0 0.0
  %1544 = vmatprep.subr.mxu0 0.0
  %1545 = vmatpush1.msra.mxu0 0.0
  %1546 = vmatprep.subr.mxu0 0.0
  %1547 = vmatpush1.msra.mxu0 0.0
  %1548 = vmatprep.mubr.f32.mxu0 0.0
  %1549 = vmatmul.mubr.f32.gmra.mrb[0].mxu0 %v1482
  %v1550 = vpop.f32.mrb[0].mxu0
  %v1551 = vadd.f32 %v1479, %v1550
  %v1552 = vpop.f32.mrb[0].mxu0
  %1553 = vdwg.mxu0
  %vm1554 = vcmask 15360
  %1555 = vst.msk [vmem:[%s12] sm:$0xff] %vm1554, %v1551
  // Predicated region
  $region50: #{qnet_forward.1} parent=0 // pred_check
    _
  $region51: #{qnet_forward.1} parent=0 // pred_check_branch
    %1557 = sbr.rel (0) target = $region53
  $region52: #{qnet_forward.1} parent=0 // pred_region
    _
  $region53: #{qnet_forward.1} parent=0 // pred_fallthru
    _
  // Predicated region
  $region54: #{qnet_forward.1} parent=0 // pred_check
    _
  $region55: #{qnet_forward.1} parent=0 // pred_check_branch
    %1559 = sbr.rel (0) target = $region57
  $region56: #{qnet_forward.1} parent=0 // pred_region
    _
  $region57: #{qnet_forward.1} parent=0 // pred_fallthru
    _

</llo_original>
